<compile_context>
chip_gen: v7x
topology: tpu7x:2x2x1
jax: 0.10.0
libtpu: 0.0.40
codegen_flags: <defaults>
</compile_context>

<pallas_src>
import jax
import jax.numpy as jnp
from jax import lax
from jax.experimental import pallas as pl
from jax.experimental.pallas import tpu as pltpu


def _round_up(x, m):
    return ((x + m - 1) // m) * m


def _gru_kernel(x_ref, wih_ref, whh_ref, bih_ref, bhh_ref,
                out_ref, hid_ref, gi_ref):
    """One grid step == one GRU layer (grid axis = layer index, sequential).

    x_ref   : (S, Bp, Hp)      layer-0 input, zero padded (feat -> Hp, batch -> Bp)
    wih_ref : (1, Hp, 3*Hp)    input->gates weights, transposed, gate blocks lane-aligned
    whh_ref : (1, Hp, 3*Hp)    hidden->gates weights, transposed, gate blocks lane-aligned
    bih_ref : (1, 1, 3*Hp)     input bias (lane-aligned gate blocks)
    bhh_ref : (1, 1, 3*Hp)     hidden bias
    out_ref : (S, Bp, Hp)      resident across layers: previous layer's output on
                               entry, overwritten with this layer's output
    hid_ref : (1, Bp, Hp)      final hidden state of this layer
    gi_ref  : (S, Bp, 3*Hp)    VMEM scratch holding the precomputed input projection
    """
    l = pl.program_id(0)
    S, Bp, Hp = out_ref.shape
    G = 3 * Hp

    wih = wih_ref[0]                                   # (Hp, 3*Hp)
    whh = whh_ref[0]                                   # (Hp, 3*Hp)
    bih = bih_ref[0]                                   # (1, 3*Hp)
    bhh_b = jnp.broadcast_to(bhh_ref[0], (Bp, G))      # hoisted broadcast

    # Layer input: layer 0 reads x, deeper layers read the resident previous
    # layer output (same padded shape).  Selected once per layer, not per step.
    x_in = jnp.where(l == 0, x_ref[...], out_ref[...])           # (S, Bp, Hp)

    # Batched input projection, hoisted out of the recurrence.
    gi_all = jnp.dot(x_in.reshape(S * Bp, Hp), wih,
                     preferred_element_type=jnp.float32) + bih    # (S*Bp, 3*Hp)
    gi_ref[...] = gi_all.reshape(S, Bp, G)

    def step(t, h):
        gi = gi_ref[t]                                            # (Bp, 3*Hp)
        gh = jnp.dot(h, whh, preferred_element_type=jnp.float32) + bhh_b
        # PyTorch gate order: r, z, n — each gate block is 128-lane aligned.
        r = jax.nn.sigmoid(gi[:, 0:Hp] + gh[:, 0:Hp])
        z = jax.nn.sigmoid(gi[:, Hp:2 * Hp] + gh[:, Hp:2 * Hp])
        n = jnp.tanh(gi[:, 2 * Hp:] + r * gh[:, 2 * Hp:])
        h_new = (1.0 - z) * n + z * h
        out_ref[t] = h_new
        return h_new

    h0 = jnp.zeros((Bp, Hp), jnp.float32)                         # h_0 = 0 (PyTorch default)
    h_final = lax.fori_loop(0, S, step, h0, unroll=True)
    hid_ref[0] = h_final


def gru_encoder_att_forward(x, params, hidden_dim, layer_dim):
    """Pallas implementation of GRUEncoder_Att.forward: returns (out, hidden)."""
    B, S, F = x.shape
    H = hidden_dim
    Hp = _round_up(H, 128)      # per-gate lane-aligned width
    Bp = _round_up(B, 8)        # sublane-aligned batch
    # Layer-0 features share the padded input slot with the hidden width.
    assert F <= Hp, "n_features larger than padded hidden width is unsupported"

    f32 = jnp.float32

    # Time-major, zero-padded layer-0 input: (S, Bp, Hp).
    x_t = jnp.transpose(x, (1, 0, 2)).astype(f32)                 # (S, B, F)
    x_pad = jnp.zeros((S, Bp, Hp), f32).at[:, :B, :F].set(x_t)

    # Stack per-layer parameters (transposed so kernel does x @ W), each gate
    # block padded to a 128-lane boundary; padding rows/cols are zero so the
    # padded hidden/feature columns stay exactly zero through the recurrence.
    wih_stack = jnp.zeros((layer_dim, Hp, 3 * Hp), f32)
    whh_stack = jnp.zeros((layer_dim, Hp, 3 * Hp), f32)
    bih_stack = jnp.zeros((layer_dim, 1, 3 * Hp), f32)
    bhh_stack = jnp.zeros((layer_dim, 1, 3 * Hp), f32)
    for li, (wih, whh, bih, bhh) in enumerate(params):
        in_l = wih.shape[1]            # F for layer 0, H for deeper layers
        wih_t = wih.T.astype(f32)      # (in_l, 3H), gate order r|z|n
        whh_t = whh.T.astype(f32)      # (H, 3H)
        for g in range(3):
            wih_stack = wih_stack.at[li, :in_l, g * Hp:g * Hp + H].set(
                wih_t[:, g * H:(g + 1) * H])
            whh_stack = whh_stack.at[li, :H, g * Hp:g * Hp + H].set(
                whh_t[:, g * H:(g + 1) * H])
            bih_stack = bih_stack.at[li, 0, g * Hp:g * Hp + H].set(
                bih[g * H:(g + 1) * H].astype(f32))
            bhh_stack = bhh_stack.at[li, 0, g * Hp:g * Hp + H].set(
                bhh[g * H:(g + 1) * H].astype(f32))

    out_sbh, hidden = pl.pallas_call(
        _gru_kernel,
        out_shape=(jax.ShapeDtypeStruct((S, Bp, Hp), f32),
                   jax.ShapeDtypeStruct((layer_dim, Bp, Hp), f32)),
        grid_spec=pltpu.PrefetchScalarGridSpec(
            num_scalar_prefetch=0,
            grid=(layer_dim,),
            in_specs=[
                pl.BlockSpec((S, Bp, Hp), lambda l: (0, 0, 0)),
                pl.BlockSpec((1, Hp, 3 * Hp), lambda l: (l, 0, 0)),
                pl.BlockSpec((1, Hp, 3 * Hp), lambda l: (l, 0, 0)),
                pl.BlockSpec((1, 1, 3 * Hp), lambda l: (l, 0, 0)),
                pl.BlockSpec((1, 1, 3 * Hp), lambda l: (l, 0, 0)),
            ],
            out_specs=(
                # constant block index -> stays resident across layers (carry)
                pl.BlockSpec((S, Bp, Hp), lambda l: (0, 0, 0)),
                pl.BlockSpec((1, Bp, Hp), lambda l: (l, 0, 0)),
            ),
            scratch_shapes=[pltpu.VMEM((S, Bp, 3 * Hp), f32)],
        ),
        compiler_params=pltpu.CompilerParams(
            dimension_semantics=("arbitrary",)),
    )(x_pad, wih_stack, whh_stack, bih_stack, bhh_stack)

    out = jnp.transpose(out_sbh[:, :B, :H], (1, 0, 2))   # (B, S, H), batch_first
    hid = hidden[:, :B, :H]                              # (layer_dim, B, H)
    return out, hid


def init_gru_params(key, n_features, hidden_dim, layer_dim):
    """Deterministic PyTorch-style init: U(-1/sqrt(H), 1/sqrt(H))."""
    k = 1.0 / float(hidden_dim) ** 0.5
    params = []
    for l in range(layer_dim):
        in_l = n_features if l == 0 else hidden_dim
        key, k1, k2, k3, k4 = jax.random.split(key, 5)
        wih = jax.random.uniform(k1, (3 * hidden_dim, in_l), jnp.float32, -k, k)
        whh = jax.random.uniform(k2, (3 * hidden_dim, hidden_dim), jnp.float32, -k, k)
        bih = jax.random.uniform(k3, (3 * hidden_dim,), jnp.float32, -k, k)
        bhh = jax.random.uniform(k4, (3 * hidden_dim,), jnp.float32, -k, k)
        params.append((wih, whh, bih, bhh))
    return params


def gru_reference(x, params, hidden_dim):
    """Pure-JAX reference with PyTorch nn.GRU semantics (batch_first)."""
    B, S, _ = x.shape
    H = hidden_dim
    inp = x.astype(jnp.float32)
    h_finals = []
    for (wih, whh, bih, bhh) in params:
        h = jnp.zeros((B, H), jnp.float32)
        outs = []
        for t in range(S):
            xt = inp[:, t, :]
            gi = jnp.dot(xt, wih.T, precision=lax.Precision.HIGHEST) + bih
            gh = jnp.dot(h, whh.T, precision=lax.Precision.HIGHEST) + bhh
            r = jax.nn.sigmoid(gi[:, :H] + gh[:, :H])
            z = jax.nn.sigmoid(gi[:, H:2 * H] + gh[:, H:2 * H])
            n = jnp.tanh(gi[:, 2 * H:] + r * gh[:, 2 * H:])
            h = (1.0 - z) * n + z * h
            outs.append(h)
        inp = jnp.stack(outs, axis=1)
        h_finals.append(h)
    return inp, jnp.stack(h_finals, axis=0)


if __name__ == "__main__":
    hidden_dim, layer_dim, n_features = 32, 2, 8
    lags, horizons = 8, 4            # stored by the module but unused in forward
    batch, seq = 4, 8

    key = jax.random.PRNGKey(0)
    pkey, xkey = jax.random.split(key)
    params = init_gru_params(pkey, n_features, hidden_dim, layer_dim)
    x = jax.random.normal(xkey, (batch, seq, n_features), jnp.float32)

    out, hidden = gru_encoder_att_forward(x, params, hidden_dim, layer_dim)
    out, hidden = jax.block_until_ready((out, hidden))

    out_ref, hid_ref = gru_reference(x, params, hidden_dim)
    assert out.shape == (batch, seq, hidden_dim)
    assert hidden.shape == (layer_dim, batch, hidden_dim)
    # Tolerance accounts for default (non-HIGHEST) MXU precision in the kernel
    # vs. the HIGHEST-precision pure-JAX reference over the 8-step recurrence.
    assert jnp.allclose(out, out_ref, atol=1e-2, rtol=1e-2)
    assert jnp.allclose(hidden, hid_ref, atol=1e-2, rtol=1e-2)
    print("KERNEL_OK")
</pallas_src>

<mosaic_0001>
module attributes {stable_mosaic.version = 11 : i64} {
  func.func @_gru_kernel(%arg0: i32, %arg1: memref<8x8x128xf32, #tpu.memory_space<vmem>>, %arg2: memref<1x128x384xf32, #tpu.memory_space<vmem>>, %arg3: memref<1x128x384xf32, #tpu.memory_space<vmem>>, %arg4: memref<1x1x384xf32, #tpu.memory_space<vmem>>, %arg5: memref<1x1x384xf32, #tpu.memory_space<vmem>>, %arg6: memref<8x8x128xf32, #tpu.memory_space<vmem>>, %arg7: memref<1x8x128xf32, #tpu.memory_space<vmem>>, %arg8: memref<8x8x384xf32, #tpu.memory_space<vmem>>) attributes {dimension_semantics = [#tpu.dimension_semantics<arbitrary>], iteration_bounds = array<i64: 2>, scalar_prefetch = 0 : i64, scratch_operands = 1 : i64, tpu.core_type = #tpu.core_type<tc>, window_params = [{pipeline_mode = #tpu.pipeline_mode<synchronous>, transform_indices = @transform_0, window_bounds = array<i64: 8, 8, 128>}, {transform_indices = @transform_1, window_bounds = array<i64: 1, 128, 384>}, {transform_indices = @transform_2, window_bounds = array<i64: 1, 128, 384>}, {transform_indices = @transform_3, window_bounds = array<i64: 1, 1, 384>}, {transform_indices = @transform_4, window_bounds = array<i64: 1, 1, 384>}, {pipeline_mode = #tpu.pipeline_mode<synchronous>, transform_indices = @transform_5, window_bounds = array<i64: 8, 8, 128>}, {transform_indices = @transform_6, window_bounds = array<i64: 1, 8, 128>}]} {
    %c0 = arith.constant 0 : index
    %c0_0 = arith.constant 0 : index
    %c0_1 = arith.constant 0 : index
    %0 = vector.load %arg2[%c0, %c0_0, %c0_1] : memref<1x128x384xf32, #tpu.memory_space<vmem>>, vector<1x128x384xf32>
    %1 = vector.shape_cast %0 : vector<1x128x384xf32> to vector<128x384xf32>
    %c0_2 = arith.constant 0 : index
    %c0_3 = arith.constant 0 : index
    %c0_4 = arith.constant 0 : index
    %2 = vector.load %arg3[%c0_2, %c0_3, %c0_4] : memref<1x128x384xf32, #tpu.memory_space<vmem>>, vector<1x128x384xf32>
    %3 = vector.shape_cast %2 : vector<1x128x384xf32> to vector<128x384xf32>
    %c0_5 = arith.constant 0 : index
    %c0_6 = arith.constant 0 : index
    %c0_7 = arith.constant 0 : index
    %4 = vector.load %arg4[%c0_5, %c0_6, %c0_7] : memref<1x1x384xf32, #tpu.memory_space<vmem>>, vector<1x1x384xf32>
    %5 = vector.shape_cast %4 : vector<1x1x384xf32> to vector<1x384xf32>
    %c0_8 = arith.constant 0 : index
    %c0_9 = arith.constant 0 : index
    %c0_10 = arith.constant 0 : index
    %6 = vector.load %arg5[%c0_8, %c0_9, %c0_10] : memref<1x1x384xf32, #tpu.memory_space<vmem>>, vector<1x1x384xf32>
    %7 = vector.shape_cast %6 : vector<1x1x384xf32> to vector<1x384xf32>
    %8 = vector.shape_cast %7 : vector<1x384xf32> to vector<1x384xf32>
    %9 = vector.broadcast %8 : vector<1x384xf32> to vector<8x384xf32>
    %c0_i32 = arith.constant 0 : i32
    %10 = arith.cmpi eq, %arg0, %c0_i32 : i32
    %c0_11 = arith.constant 0 : index
    %c0_12 = arith.constant 0 : index
    %c0_13 = arith.constant 0 : index
    %11 = vector.load %arg1[%c0_11, %c0_12, %c0_13] : memref<8x8x128xf32, #tpu.memory_space<vmem>>, vector<8x8x128xf32>
    %c0_14 = arith.constant 0 : index
    %c0_15 = arith.constant 0 : index
    %c0_16 = arith.constant 0 : index
    %12 = vector.load %arg6[%c0_14, %c0_15, %c0_16] : memref<8x8x128xf32, #tpu.memory_space<vmem>>, vector<8x8x128xf32>
    %13 = arith.select %10, %11, %12 : vector<8x8x128xf32>
    %14 = vector.shape_cast %13 : vector<8x8x128xf32> to vector<64x128xf32>
    %cst = arith.constant dense<0.000000e+00> : vector<64x384xf32>
    %15 = tpu.matmul %14, %1, %cst {dimension_numbers = #tpu.dot_dimension_numbers<[1], [0], [0], [1], [0, 0, 1, 1], [], []>} : vector<64x128xf32>, vector<128x384xf32>, vector<64x384xf32> -> vector<64x384xf32>
    %16 = vector.broadcast %5 : vector<1x384xf32> to vector<64x384xf32>
    %17 = arith.addf %15, %16 : vector<64x384xf32>
    %18 = vector.shape_cast %17 : vector<64x384xf32> to vector<8x8x384xf32>
    %c0_17 = arith.constant 0 : index
    %c0_18 = arith.constant 0 : index
    %c0_19 = arith.constant 0 : index
    %19 = vector.load %arg8[%c0_17, %c0_18, %c0_19] : memref<8x8x384xf32, #tpu.memory_space<vmem>>, vector<8x8x384xf32>
    tpu.vector_store %arg8[%c0_17, %c0_18, %c0_19], %18 {strides = array<i32>} : memref<8x8x384xf32, #tpu.memory_space<vmem>>, vector<8x8x384xf32>,
    %cst_20 = arith.constant 0.000000e+00 : f32
    %20 = vector.broadcast %cst_20 : f32 to vector<8x128xf32>
    %c0_i32_21 = arith.constant 0 : i32
    %21 = arith.index_cast %c0_i32_21 : i32 to index
    %c0_22 = arith.constant 0 : index
    %c0_23 = arith.constant 0 : index
    %22 = vector.load %arg8[%21, %c0_22, %c0_23] : memref<8x8x384xf32, #tpu.memory_space<vmem>>, vector<1x8x384xf32>
    %23 = vector.shape_cast %22 : vector<1x8x384xf32> to vector<8x384xf32>
    %cst_24 = arith.constant dense<0.000000e+00> : vector<8x384xf32>
    %24 = tpu.matmul %20, %3, %cst_24 {dimension_numbers = #tpu.dot_dimension_numbers<[1], [0], [0], [1], [0, 0, 1, 1], [], []>} : vector<8x128xf32>, vector<128x384xf32>, vector<8x384xf32> -> vector<8x384xf32>
    %25 = arith.addf %24, %9 : vector<8x384xf32>
    %26 = vector.extract_strided_slice %23 {offsets = [0, 0], sizes = [8, 128], strides = [1, 1]} : vector<8x384xf32> to vector<8x128xf32>
    %27 = vector.extract_strided_slice %25 {offsets = [0, 0], sizes = [8, 128], strides = [1, 1]} : vector<8x384xf32> to vector<8x128xf32>
    %28 = arith.addf %26, %27 : vector<8x128xf32>
    %29 = arith.negf %28 : vector<8x128xf32>
    %30 = math.exp %29 : vector<8x128xf32>
    %cst_25 = arith.constant 1.000000e+00 : f32
    %31 = vector.broadcast %cst_25 : f32 to vector<8x128xf32>
    %32 = arith.addf %31, %30 : vector<8x128xf32>
    %33 = arith.divf %31, %32 : vector<8x128xf32>
    %34 = vector.extract_strided_slice %23 {offsets = [0, 128], sizes = [8, 128], strides = [1, 1]} : vector<8x384xf32> to vector<8x128xf32>
    %35 = vector.extract_strided_slice %25 {offsets = [0, 128], sizes = [8, 128], strides = [1, 1]} : vector<8x384xf32> to vector<8x128xf32>
    %36 = arith.addf %34, %35 : vector<8x128xf32>
    %37 = arith.negf %36 : vector<8x128xf32>
    %38 = math.exp %37 : vector<8x128xf32>
    %cst_26 = arith.constant 1.000000e+00 : f32
    %39 = vector.broadcast %cst_26 : f32 to vector<8x128xf32>
    %40 = arith.addf %39, %38 : vector<8x128xf32>
    %41 = arith.divf %39, %40 : vector<8x128xf32>
    %42 = vector.extract_strided_slice %23 {offsets = [0, 256], sizes = [8, 128], strides = [1, 1]} : vector<8x384xf32> to vector<8x128xf32>
    %43 = vector.extract_strided_slice %25 {offsets = [0, 256], sizes = [8, 128], strides = [1, 1]} : vector<8x384xf32> to vector<8x128xf32>
    %44 = arith.mulf %33, %43 : vector<8x128xf32>
    %45 = arith.addf %42, %44 : vector<8x128xf32>
    %46 = math.tanh %45 : vector<8x128xf32>
    %cst_27 = arith.constant 1.000000e+00 : f32
    %47 = vector.broadcast %cst_27 : f32 to vector<8x128xf32>
    %48 = arith.subf %47, %41 : vector<8x128xf32>
    %49 = arith.mulf %48, %46 : vector<8x128xf32>
    %50 = arith.mulf %41, %20 : vector<8x128xf32>
    %51 = arith.addf %49, %50 : vector<8x128xf32>
    %52 = arith.index_cast %c0_i32_21 : i32 to index
    %c0_28 = arith.constant 0 : index
    %c0_29 = arith.constant 0 : index
    %53 = vector.load %arg6[%52, %c0_28, %c0_29] : memref<8x8x128xf32, #tpu.memory_space<vmem>>, vector<1x8x128xf32>
    %54 = vector.shape_cast %53 : vector<1x8x128xf32> to vector<8x128xf32>
    %55 = vector.shape_cast %51 : vector<8x128xf32> to vector<1x8x128xf32>
    tpu.vector_store %arg6[%52, %c0_28, %c0_29], %55 {strides = array<i32>} : memref<8x8x128xf32, #tpu.memory_space<vmem>>, vector<1x8x128xf32>,
    %c1_i32 = arith.constant 1 : i32
    %56 = arith.index_cast %c1_i32 : i32 to index
    %c0_30 = arith.constant 0 : index
    %c0_31 = arith.constant 0 : index
    %57 = vector.load %arg8[%56, %c0_30, %c0_31] : memref<8x8x384xf32, #tpu.memory_space<vmem>>, vector<1x8x384xf32>
    %58 = vector.shape_cast %57 : vector<1x8x384xf32> to vector<8x384xf32>
    %cst_32 = arith.constant dense<0.000000e+00> : vector<8x384xf32>
    %59 = tpu.matmul %51, %3, %cst_32 {dimension_numbers = #tpu.dot_dimension_numbers<[1], [0], [0], [1], [0, 0, 1, 1], [], []>} : vector<8x128xf32>, vector<128x384xf32>, vector<8x384xf32> -> vector<8x384xf32>
    %60 = arith.addf %59, %9 : vector<8x384xf32>
    %61 = vector.extract_strided_slice %58 {offsets = [0, 0], sizes = [8, 128], strides = [1, 1]} : vector<8x384xf32> to vector<8x128xf32>
    %62 = vector.extract_strided_slice %60 {offsets = [0, 0], sizes = [8, 128], strides = [1, 1]} : vector<8x384xf32> to vector<8x128xf32>
    %63 = arith.addf %61, %62 : vector<8x128xf32>
    %64 = arith.negf %63 : vector<8x128xf32>
    %65 = math.exp %64 : vector<8x128xf32>
    %cst_33 = arith.constant 1.000000e+00 : f32
    %66 = vector.broadcast %cst_33 : f32 to vector<8x128xf32>
    %67 = arith.addf %66, %65 : vector<8x128xf32>
    %68 = arith.divf %66, %67 : vector<8x128xf32>
    %69 = vector.extract_strided_slice %58 {offsets = [0, 128], sizes = [8, 128], strides = [1, 1]} : vector<8x384xf32> to vector<8x128xf32>
    %70 = vector.extract_strided_slice %60 {offsets = [0, 128], sizes = [8, 128], strides = [1, 1]} : vector<8x384xf32> to vector<8x128xf32>
    %71 = arith.addf %69, %70 : vector<8x128xf32>
    %72 = arith.negf %71 : vector<8x128xf32>
    %73 = math.exp %72 : vector<8x128xf32>
    %cst_34 = arith.constant 1.000000e+00 : f32
    %74 = vector.broadcast %cst_34 : f32 to vector<8x128xf32>
    %75 = arith.addf %74, %73 : vector<8x128xf32>
    %76 = arith.divf %74, %75 : vector<8x128xf32>
    %77 = vector.extract_strided_slice %58 {offsets = [0, 256], sizes = [8, 128], strides = [1, 1]} : vector<8x384xf32> to vector<8x128xf32>
    %78 = vector.extract_strided_slice %60 {offsets = [0, 256], sizes = [8, 128], strides = [1, 1]} : vector<8x384xf32> to vector<8x128xf32>
    %79 = arith.mulf %68, %78 : vector<8x128xf32>
    %80 = arith.addf %77, %79 : vector<8x128xf32>
    %81 = math.tanh %80 : vector<8x128xf32>
    %cst_35 = arith.constant 1.000000e+00 : f32
    %82 = vector.broadcast %cst_35 : f32 to vector<8x128xf32>
    %83 = arith.subf %82, %76 : vector<8x128xf32>
    %84 = arith.mulf %83, %81 : vector<8x128xf32>
    %85 = arith.mulf %76, %51 : vector<8x128xf32>
    %86 = arith.addf %84, %85 : vector<8x128xf32>
    %87 = arith.index_cast %c1_i32 : i32 to index
    %c0_36 = arith.constant 0 : index
    %c0_37 = arith.constant 0 : index
    %88 = vector.load %arg6[%87, %c0_36, %c0_37] : memref<8x8x128xf32, #tpu.memory_space<vmem>>, vector<1x8x128xf32>
    %89 = vector.shape_cast %88 : vector<1x8x128xf32> to vector<8x128xf32>
    %90 = vector.shape_cast %86 : vector<8x128xf32> to vector<1x8x128xf32>
    tpu.vector_store %arg6[%87, %c0_36, %c0_37], %90 {strides = array<i32>} : memref<8x8x128xf32, #tpu.memory_space<vmem>>, vector<1x8x128xf32>,
    %c2_i32 = arith.constant 2 : i32
    %91 = arith.index_cast %c2_i32 : i32 to index
    %c0_38 = arith.constant 0 : index
    %c0_39 = arith.constant 0 : index
    %92 = vector.load %arg8[%91, %c0_38, %c0_39] : memref<8x8x384xf32, #tpu.memory_space<vmem>>, vector<1x8x384xf32>
    %93 = vector.shape_cast %92 : vector<1x8x384xf32> to vector<8x384xf32>
    %cst_40 = arith.constant dense<0.000000e+00> : vector<8x384xf32>
    %94 = tpu.matmul %86, %3, %cst_40 {dimension_numbers = #tpu.dot_dimension_numbers<[1], [0], [0], [1], [0, 0, 1, 1], [], []>} : vector<8x128xf32>, vector<128x384xf32>, vector<8x384xf32> -> vector<8x384xf32>
    %95 = arith.addf %94, %9 : vector<8x384xf32>
    %96 = vector.extract_strided_slice %93 {offsets = [0, 0], sizes = [8, 128], strides = [1, 1]} : vector<8x384xf32> to vector<8x128xf32>
    %97 = vector.extract_strided_slice %95 {offsets = [0, 0], sizes = [8, 128], strides = [1, 1]} : vector<8x384xf32> to vector<8x128xf32>
    %98 = arith.addf %96, %97 : vector<8x128xf32>
    %99 = arith.negf %98 : vector<8x128xf32>
    %100 = math.exp %99 : vector<8x128xf32>
    %cst_41 = arith.constant 1.000000e+00 : f32
    %101 = vector.broadcast %cst_41 : f32 to vector<8x128xf32>
    %102 = arith.addf %101, %100 : vector<8x128xf32>
    %103 = arith.divf %101, %102 : vector<8x128xf32>
    %104 = vector.extract_strided_slice %93 {offsets = [0, 128], sizes = [8, 128], strides = [1, 1]} : vector<8x384xf32> to vector<8x128xf32>
    %105 = vector.extract_strided_slice %95 {offsets = [0, 128], sizes = [8, 128], strides = [1, 1]} : vector<8x384xf32> to vector<8x128xf32>
    %106 = arith.addf %104, %105 : vector<8x128xf32>
    %107 = arith.negf %106 : vector<8x128xf32>
    %108 = math.exp %107 : vector<8x128xf32>
    %cst_42 = arith.constant 1.000000e+00 : f32
    %109 = vector.broadcast %cst_42 : f32 to vector<8x128xf32>
    %110 = arith.addf %109, %108 : vector<8x128xf32>
    %111 = arith.divf %109, %110 : vector<8x128xf32>
    %112 = vector.extract_strided_slice %93 {offsets = [0, 256], sizes = [8, 128], strides = [1, 1]} : vector<8x384xf32> to vector<8x128xf32>
    %113 = vector.extract_strided_slice %95 {offsets = [0, 256], sizes = [8, 128], strides = [1, 1]} : vector<8x384xf32> to vector<8x128xf32>
    %114 = arith.mulf %103, %113 : vector<8x128xf32>
    %115 = arith.addf %112, %114 : vector<8x128xf32>
    %116 = math.tanh %115 : vector<8x128xf32>
    %cst_43 = arith.constant 1.000000e+00 : f32
    %117 = vector.broadcast %cst_43 : f32 to vector<8x128xf32>
    %118 = arith.subf %117, %111 : vector<8x128xf32>
    %119 = arith.mulf %118, %116 : vector<8x128xf32>
    %120 = arith.mulf %111, %86 : vector<8x128xf32>
    %121 = arith.addf %119, %120 : vector<8x128xf32>
    %122 = arith.index_cast %c2_i32 : i32 to index
    %c0_44 = arith.constant 0 : index
    %c0_45 = arith.constant 0 : index
    %123 = vector.load %arg6[%122, %c0_44, %c0_45] : memref<8x8x128xf32, #tpu.memory_space<vmem>>, vector<1x8x128xf32>
    %124 = vector.shape_cast %123 : vector<1x8x128xf32> to vector<8x128xf32>
    %125 = vector.shape_cast %121 : vector<8x128xf32> to vector<1x8x128xf32>
    tpu.vector_store %arg6[%122, %c0_44, %c0_45], %125 {strides = array<i32>} : memref<8x8x128xf32, #tpu.memory_space<vmem>>, vector<1x8x128xf32>,
    %c3_i32 = arith.constant 3 : i32
    %126 = arith.index_cast %c3_i32 : i32 to index
    %c0_46 = arith.constant 0 : index
    %c0_47 = arith.constant 0 : index
    %127 = vector.load %arg8[%126, %c0_46, %c0_47] : memref<8x8x384xf32, #tpu.memory_space<vmem>>, vector<1x8x384xf32>
    %128 = vector.shape_cast %127 : vector<1x8x384xf32> to vector<8x384xf32>
    %cst_48 = arith.constant dense<0.000000e+00> : vector<8x384xf32>
    %129 = tpu.matmul %121, %3, %cst_48 {dimension_numbers = #tpu.dot_dimension_numbers<[1], [0], [0], [1], [0, 0, 1, 1], [], []>} : vector<8x128xf32>, vector<128x384xf32>, vector<8x384xf32> -> vector<8x384xf32>
    %130 = arith.addf %129, %9 : vector<8x384xf32>
    %131 = vector.extract_strided_slice %128 {offsets = [0, 0], sizes = [8, 128], strides = [1, 1]} : vector<8x384xf32> to vector<8x128xf32>
    %132 = vector.extract_strided_slice %130 {offsets = [0, 0], sizes = [8, 128], strides = [1, 1]} : vector<8x384xf32> to vector<8x128xf32>
    %133 = arith.addf %131, %132 : vector<8x128xf32>
    %134 = arith.negf %133 : vector<8x128xf32>
    %135 = math.exp %134 : vector<8x128xf32>
    %cst_49 = arith.constant 1.000000e+00 : f32
    %136 = vector.broadcast %cst_49 : f32 to vector<8x128xf32>
    %137 = arith.addf %136, %135 : vector<8x128xf32>
    %138 = arith.divf %136, %137 : vector<8x128xf32>
    %139 = vector.extract_strided_slice %128 {offsets = [0, 128], sizes = [8, 128], strides = [1, 1]} : vector<8x384xf32> to vector<8x128xf32>
    %140 = vector.extract_strided_slice %130 {offsets = [0, 128], sizes = [8, 128], strides = [1, 1]} : vector<8x384xf32> to vector<8x128xf32>
    %141 = arith.addf %139, %140 : vector<8x128xf32>
    %142 = arith.negf %141 : vector<8x128xf32>
    %143 = math.exp %142 : vector<8x128xf32>
    %cst_50 = arith.constant 1.000000e+00 : f32
    %144 = vector.broadcast %cst_50 : f32 to vector<8x128xf32>
    %145 = arith.addf %144, %143 : vector<8x128xf32>
    %146 = arith.divf %144, %145 : vector<8x128xf32>
    %147 = vector.extract_strided_slice %128 {offsets = [0, 256], sizes = [8, 128], strides = [1, 1]} : vector<8x384xf32> to vector<8x128xf32>
    %148 = vector.extract_strided_slice %130 {offsets = [0, 256], sizes = [8, 128], strides = [1, 1]} : vector<8x384xf32> to vector<8x128xf32>
    %149 = arith.mulf %138, %148 : vector<8x128xf32>
    %150 = arith.addf %147, %149 : vector<8x128xf32>
    %151 = math.tanh %150 : vector<8x128xf32>
    %cst_51 = arith.constant 1.000000e+00 : f32
    %152 = vector.broadcast %cst_51 : f32 to vector<8x128xf32>
    %153 = arith.subf %152, %146 : vector<8x128xf32>
    %154 = arith.mulf %153, %151 : vector<8x128xf32>
    %155 = arith.mulf %146, %121 : vector<8x128xf32>
    %156 = arith.addf %154, %155 : vector<8x128xf32>
    %157 = arith.index_cast %c3_i32 : i32 to index
    %c0_52 = arith.constant 0 : index
    %c0_53 = arith.constant 0 : index
    %158 = vector.load %arg6[%157, %c0_52, %c0_53] : memref<8x8x128xf32, #tpu.memory_space<vmem>>, vector<1x8x128xf32>
    %159 = vector.shape_cast %158 : vector<1x8x128xf32> to vector<8x128xf32>
    %160 = vector.shape_cast %156 : vector<8x128xf32> to vector<1x8x128xf32>
    tpu.vector_store %arg6[%157, %c0_52, %c0_53], %160 {strides = array<i32>} : memref<8x8x128xf32, #tpu.memory_space<vmem>>, vector<1x8x128xf32>,
    %c4_i32 = arith.constant 4 : i32
    %161 = arith.index_cast %c4_i32 : i32 to index
    %c0_54 = arith.constant 0 : index
    %c0_55 = arith.constant 0 : index
    %162 = vector.load %arg8[%161, %c0_54, %c0_55] : memref<8x8x384xf32, #tpu.memory_space<vmem>>, vector<1x8x384xf32>
    %163 = vector.shape_cast %162 : vector<1x8x384xf32> to vector<8x384xf32>
    %cst_56 = arith.constant dense<0.000000e+00> : vector<8x384xf32>
    %164 = tpu.matmul %156, %3, %cst_56 {dimension_numbers = #tpu.dot_dimension_numbers<[1], [0], [0], [1], [0, 0, 1, 1], [], []>} : vector<8x128xf32>, vector<128x384xf32>, vector<8x384xf32> -> vector<8x384xf32>
    %165 = arith.addf %164, %9 : vector<8x384xf32>
    %166 = vector.extract_strided_slice %163 {offsets = [0, 0], sizes = [8, 128], strides = [1, 1]} : vector<8x384xf32> to vector<8x128xf32>
    %167 = vector.extract_strided_slice %165 {offsets = [0, 0], sizes = [8, 128], strides = [1, 1]} : vector<8x384xf32> to vector<8x128xf32>
    %168 = arith.addf %166, %167 : vector<8x128xf32>
    %169 = arith.negf %168 : vector<8x128xf32>
    %170 = math.exp %169 : vector<8x128xf32>
    %cst_57 = arith.constant 1.000000e+00 : f32
    %171 = vector.broadcast %cst_57 : f32 to vector<8x128xf32>
    %172 = arith.addf %171, %170 : vector<8x128xf32>
    %173 = arith.divf %171, %172 : vector<8x128xf32>
    %174 = vector.extract_strided_slice %163 {offsets = [0, 128], sizes = [8, 128], strides = [1, 1]} : vector<8x384xf32> to vector<8x128xf32>
    %175 = vector.extract_strided_slice %165 {offsets = [0, 128], sizes = [8, 128], strides = [1, 1]} : vector<8x384xf32> to vector<8x128xf32>
    %176 = arith.addf %174, %175 : vector<8x128xf32>
    %177 = arith.negf %176 : vector<8x128xf32>
    %178 = math.exp %177 : vector<8x128xf32>
    %cst_58 = arith.constant 1.000000e+00 : f32
    %179 = vector.broadcast %cst_58 : f32 to vector<8x128xf32>
    %180 = arith.addf %179, %178 : vector<8x128xf32>
    %181 = arith.divf %179, %180 : vector<8x128xf32>
    %182 = vector.extract_strided_slice %163 {offsets = [0, 256], sizes = [8, 128], strides = [1, 1]} : vector<8x384xf32> to vector<8x128xf32>
    %183 = vector.extract_strided_slice %165 {offsets = [0, 256], sizes = [8, 128], strides = [1, 1]} : vector<8x384xf32> to vector<8x128xf32>
    %184 = arith.mulf %173, %183 : vector<8x128xf32>
    %185 = arith.addf %182, %184 : vector<8x128xf32>
    %186 = math.tanh %185 : vector<8x128xf32>
    %cst_59 = arith.constant 1.000000e+00 : f32
    %187 = vector.broadcast %cst_59 : f32 to vector<8x128xf32>
    %188 = arith.subf %187, %181 : vector<8x128xf32>
    %189 = arith.mulf %188, %186 : vector<8x128xf32>
    %190 = arith.mulf %181, %156 : vector<8x128xf32>
    %191 = arith.addf %189, %190 : vector<8x128xf32>
    %192 = arith.index_cast %c4_i32 : i32 to index
    %c0_60 = arith.constant 0 : index
    %c0_61 = arith.constant 0 : index
    %193 = vector.load %arg6[%192, %c0_60, %c0_61] : memref<8x8x128xf32, #tpu.memory_space<vmem>>, vector<1x8x128xf32>
    %194 = vector.shape_cast %193 : vector<1x8x128xf32> to vector<8x128xf32>
    %195 = vector.shape_cast %191 : vector<8x128xf32> to vector<1x8x128xf32>
    tpu.vector_store %arg6[%192, %c0_60, %c0_61], %195 {strides = array<i32>} : memref<8x8x128xf32, #tpu.memory_space<vmem>>, vector<1x8x128xf32>,
    %c5_i32 = arith.constant 5 : i32
    %196 = arith.index_cast %c5_i32 : i32 to index
    %c0_62 = arith.constant 0 : index
    %c0_63 = arith.constant 0 : index
    %197 = vector.load %arg8[%196, %c0_62, %c0_63] : memref<8x8x384xf32, #tpu.memory_space<vmem>>, vector<1x8x384xf32>
    %198 = vector.shape_cast %197 : vector<1x8x384xf32> to vector<8x384xf32>
    %cst_64 = arith.constant dense<0.000000e+00> : vector<8x384xf32>
    %199 = tpu.matmul %191, %3, %cst_64 {dimension_numbers = #tpu.dot_dimension_numbers<[1], [0], [0], [1], [0, 0, 1, 1], [], []>} : vector<8x128xf32>, vector<128x384xf32>, vector<8x384xf32> -> vector<8x384xf32>
    %200 = arith.addf %199, %9 : vector<8x384xf32>
    %201 = vector.extract_strided_slice %198 {offsets = [0, 0], sizes = [8, 128], strides = [1, 1]} : vector<8x384xf32> to vector<8x128xf32>
    %202 = vector.extract_strided_slice %200 {offsets = [0, 0], sizes = [8, 128], strides = [1, 1]} : vector<8x384xf32> to vector<8x128xf32>
    %203 = arith.addf %201, %202 : vector<8x128xf32>
    %204 = arith.negf %203 : vector<8x128xf32>
    %205 = math.exp %204 : vector<8x128xf32>
    %cst_65 = arith.constant 1.000000e+00 : f32
    %206 = vector.broadcast %cst_65 : f32 to vector<8x128xf32>
    %207 = arith.addf %206, %205 : vector<8x128xf32>
    %208 = arith.divf %206, %207 : vector<8x128xf32>
    %209 = vector.extract_strided_slice %198 {offsets = [0, 128], sizes = [8, 128], strides = [1, 1]} : vector<8x384xf32> to vector<8x128xf32>
    %210 = vector.extract_strided_slice %200 {offsets = [0, 128], sizes = [8, 128], strides = [1, 1]} : vector<8x384xf32> to vector<8x128xf32>
    %211 = arith.addf %209, %210 : vector<8x128xf32>
    %212 = arith.negf %211 : vector<8x128xf32>
    %213 = math.exp %212 : vector<8x128xf32>
    %cst_66 = arith.constant 1.000000e+00 : f32
    %214 = vector.broadcast %cst_66 : f32 to vector<8x128xf32>
    %215 = arith.addf %214, %213 : vector<8x128xf32>
    %216 = arith.divf %214, %215 : vector<8x128xf32>
    %217 = vector.extract_strided_slice %198 {offsets = [0, 256], sizes = [8, 128], strides = [1, 1]} : vector<8x384xf32> to vector<8x128xf32>
    %218 = vector.extract_strided_slice %200 {offsets = [0, 256], sizes = [8, 128], strides = [1, 1]} : vector<8x384xf32> to vector<8x128xf32>
    %219 = arith.mulf %208, %218 : vector<8x128xf32>
    %220 = arith.addf %217, %219 : vector<8x128xf32>
    %221 = math.tanh %220 : vector<8x128xf32>
    %cst_67 = arith.constant 1.000000e+00 : f32
    %222 = vector.broadcast %cst_67 : f32 to vector<8x128xf32>
    %223 = arith.subf %222, %216 : vector<8x128xf32>
    %224 = arith.mulf %223, %221 : vector<8x128xf32>
    %225 = arith.mulf %216, %191 : vector<8x128xf32>
    %226 = arith.addf %224, %225 : vector<8x128xf32>
    %227 = arith.index_cast %c5_i32 : i32 to index
    %c0_68 = arith.constant 0 : index
    %c0_69 = arith.constant 0 : index
    %228 = vector.load %arg6[%227, %c0_68, %c0_69] : memref<8x8x128xf32, #tpu.memory_space<vmem>>, vector<1x8x128xf32>
    %229 = vector.shape_cast %228 : vector<1x8x128xf32> to vector<8x128xf32>
    %230 = vector.shape_cast %226 : vector<8x128xf32> to vector<1x8x128xf32>
    tpu.vector_store %arg6[%227, %c0_68, %c0_69], %230 {strides = array<i32>} : memref<8x8x128xf32, #tpu.memory_space<vmem>>, vector<1x8x128xf32>,
    %c6_i32 = arith.constant 6 : i32
    %231 = arith.index_cast %c6_i32 : i32 to index
    %c0_70 = arith.constant 0 : index
    %c0_71 = arith.constant 0 : index
    %232 = vector.load %arg8[%231, %c0_70, %c0_71] : memref<8x8x384xf32, #tpu.memory_space<vmem>>, vector<1x8x384xf32>
    %233 = vector.shape_cast %232 : vector<1x8x384xf32> to vector<8x384xf32>
    %cst_72 = arith.constant dense<0.000000e+00> : vector<8x384xf32>
    %234 = tpu.matmul %226, %3, %cst_72 {dimension_numbers = #tpu.dot_dimension_numbers<[1], [0], [0], [1], [0, 0, 1, 1], [], []>} : vector<8x128xf32>, vector<128x384xf32>, vector<8x384xf32> -> vector<8x384xf32>
    %235 = arith.addf %234, %9 : vector<8x384xf32>
    %236 = vector.extract_strided_slice %233 {offsets = [0, 0], sizes = [8, 128], strides = [1, 1]} : vector<8x384xf32> to vector<8x128xf32>
    %237 = vector.extract_strided_slice %235 {offsets = [0, 0], sizes = [8, 128], strides = [1, 1]} : vector<8x384xf32> to vector<8x128xf32>
    %238 = arith.addf %236, %237 : vector<8x128xf32>
    %239 = arith.negf %238 : vector<8x128xf32>
    %240 = math.exp %239 : vector<8x128xf32>
    %cst_73 = arith.constant 1.000000e+00 : f32
    %241 = vector.broadcast %cst_73 : f32 to vector<8x128xf32>
    %242 = arith.addf %241, %240 : vector<8x128xf32>
    %243 = arith.divf %241, %242 : vector<8x128xf32>
    %244 = vector.extract_strided_slice %233 {offsets = [0, 128], sizes = [8, 128], strides = [1, 1]} : vector<8x384xf32> to vector<8x128xf32>
    %245 = vector.extract_strided_slice %235 {offsets = [0, 128], sizes = [8, 128], strides = [1, 1]} : vector<8x384xf32> to vector<8x128xf32>
    %246 = arith.addf %244, %245 : vector<8x128xf32>
    %247 = arith.negf %246 : vector<8x128xf32>
    %248 = math.exp %247 : vector<8x128xf32>
    %cst_74 = arith.constant 1.000000e+00 : f32
    %249 = vector.broadcast %cst_74 : f32 to vector<8x128xf32>
    %250 = arith.addf %249, %248 : vector<8x128xf32>
    %251 = arith.divf %249, %250 : vector<8x128xf32>
    %252 = vector.extract_strided_slice %233 {offsets = [0, 256], sizes = [8, 128], strides = [1, 1]} : vector<8x384xf32> to vector<8x128xf32>
    %253 = vector.extract_strided_slice %235 {offsets = [0, 256], sizes = [8, 128], strides = [1, 1]} : vector<8x384xf32> to vector<8x128xf32>
    %254 = arith.mulf %243, %253 : vector<8x128xf32>
    %255 = arith.addf %252, %254 : vector<8x128xf32>
    %256 = math.tanh %255 : vector<8x128xf32>
    %cst_75 = arith.constant 1.000000e+00 : f32
    %257 = vector.broadcast %cst_75 : f32 to vector<8x128xf32>
    %258 = arith.subf %257, %251 : vector<8x128xf32>
    %259 = arith.mulf %258, %256 : vector<8x128xf32>
    %260 = arith.mulf %251, %226 : vector<8x128xf32>
    %261 = arith.addf %259, %260 : vector<8x128xf32>
    %262 = arith.index_cast %c6_i32 : i32 to index
    %c0_76 = arith.constant 0 : index
    %c0_77 = arith.constant 0 : index
    %263 = vector.load %arg6[%262, %c0_76, %c0_77] : memref<8x8x128xf32, #tpu.memory_space<vmem>>, vector<1x8x128xf32>
    %264 = vector.shape_cast %263 : vector<1x8x128xf32> to vector<8x128xf32>
    %265 = vector.shape_cast %261 : vector<8x128xf32> to vector<1x8x128xf32>
    tpu.vector_store %arg6[%262, %c0_76, %c0_77], %265 {strides = array<i32>} : memref<8x8x128xf32, #tpu.memory_space<vmem>>, vector<1x8x128xf32>,
    %c7_i32 = arith.constant 7 : i32
    %266 = arith.index_cast %c7_i32 : i32 to index
    %c0_78 = arith.constant 0 : index
    %c0_79 = arith.constant 0 : index
    %267 = vector.load %arg8[%266, %c0_78, %c0_79] : memref<8x8x384xf32, #tpu.memory_space<vmem>>, vector<1x8x384xf32>
    %268 = vector.shape_cast %267 : vector<1x8x384xf32> to vector<8x384xf32>
    %cst_80 = arith.constant dense<0.000000e+00> : vector<8x384xf32>
    %269 = tpu.matmul %261, %3, %cst_80 {dimension_numbers = #tpu.dot_dimension_numbers<[1], [0], [0], [1], [0, 0, 1, 1], [], []>} : vector<8x128xf32>, vector<128x384xf32>, vector<8x384xf32> -> vector<8x384xf32>
    %270 = arith.addf %269, %9 : vector<8x384xf32>
    %271 = vector.extract_strided_slice %268 {offsets = [0, 0], sizes = [8, 128], strides = [1, 1]} : vector<8x384xf32> to vector<8x128xf32>
    %272 = vector.extract_strided_slice %270 {offsets = [0, 0], sizes = [8, 128], strides = [1, 1]} : vector<8x384xf32> to vector<8x128xf32>
    %273 = arith.addf %271, %272 : vector<8x128xf32>
    %274 = arith.negf %273 : vector<8x128xf32>
    %275 = math.exp %274 : vector<8x128xf32>
    %cst_81 = arith.constant 1.000000e+00 : f32
    %276 = vector.broadcast %cst_81 : f32 to vector<8x128xf32>
    %277 = arith.addf %276, %275 : vector<8x128xf32>
    %278 = arith.divf %276, %277 : vector<8x128xf32>
    %279 = vector.extract_strided_slice %268 {offsets = [0, 128], sizes = [8, 128], strides = [1, 1]} : vector<8x384xf32> to vector<8x128xf32>
    %280 = vector.extract_strided_slice %270 {offsets = [0, 128], sizes = [8, 128], strides = [1, 1]} : vector<8x384xf32> to vector<8x128xf32>
    %281 = arith.addf %279, %280 : vector<8x128xf32>
    %282 = arith.negf %281 : vector<8x128xf32>
    %283 = math.exp %282 : vector<8x128xf32>
    %cst_82 = arith.constant 1.000000e+00 : f32
    %284 = vector.broadcast %cst_82 : f32 to vector<8x128xf32>
    %285 = arith.addf %284, %283 : vector<8x128xf32>
    %286 = arith.divf %284, %285 : vector<8x128xf32>
    %287 = vector.extract_strided_slice %268 {offsets = [0, 256], sizes = [8, 128], strides = [1, 1]} : vector<8x384xf32> to vector<8x128xf32>
    %288 = vector.extract_strided_slice %270 {offsets = [0, 256], sizes = [8, 128], strides = [1, 1]} : vector<8x384xf32> to vector<8x128xf32>
    %289 = arith.mulf %278, %288 : vector<8x128xf32>
    %290 = arith.addf %287, %289 : vector<8x128xf32>
    %291 = math.tanh %290 : vector<8x128xf32>
    %cst_83 = arith.constant 1.000000e+00 : f32
    %292 = vector.broadcast %cst_83 : f32 to vector<8x128xf32>
    %293 = arith.subf %292, %286 : vector<8x128xf32>
    %294 = arith.mulf %293, %291 : vector<8x128xf32>
    %295 = arith.mulf %286, %261 : vector<8x128xf32>
    %296 = arith.addf %294, %295 : vector<8x128xf32>
    %297 = arith.index_cast %c7_i32 : i32 to index
    %c0_84 = arith.constant 0 : index
    %c0_85 = arith.constant 0 : index
    %298 = vector.load %arg6[%297, %c0_84, %c0_85] : memref<8x8x128xf32, #tpu.memory_space<vmem>>, vector<1x8x128xf32>
    %299 = vector.shape_cast %298 : vector<1x8x128xf32> to vector<8x128xf32>
    %300 = vector.shape_cast %296 : vector<8x128xf32> to vector<1x8x128xf32>
    tpu.vector_store %arg6[%297, %c0_84, %c0_85], %300 {strides = array<i32>} : memref<8x8x128xf32, #tpu.memory_space<vmem>>, vector<1x8x128xf32>,
    %c8_i32 = arith.constant 8 : i32
    %c0_86 = arith.constant 0 : index
    %c0_87 = arith.constant 0 : index
    %c0_88 = arith.constant 0 : index
    %301 = vector.load %arg7[%c0_86, %c0_87, %c0_88] : memref<1x8x128xf32, #tpu.memory_space<vmem>>, vector<1x8x128xf32>
    %302 = vector.shape_cast %301 : vector<1x8x128xf32> to vector<8x128xf32>
    %303 = vector.shape_cast %296 : vector<8x128xf32> to vector<1x8x128xf32>
    tpu.vector_store %arg7[%c0_86, %c0_87, %c0_88], %303 {strides = array<i32>} : memref<1x8x128xf32, #tpu.memory_space<vmem>>, vector<1x8x128xf32>,
    return
  }
  func.func @transform_0(%arg0: i32) -> (i32, i32, i32) {
    %c0_i32 = arith.constant 0 : i32
    %c0_i32_0 = arith.constant 0 : i32
    %c0_i32_1 = arith.constant 0 : i32
    %c0_i32_2 = arith.constant 0 : i32
    return %c0_i32, %c0_i32_0, %c0_i32_1 : i32, i32, i32
  }
  func.func @transform_1(%arg0: i32) -> (i32, i32, i32) {
    %c0_i32 = arith.constant 0 : i32
    %c0_i32_0 = arith.constant 0 : i32
    %c0_i32_1 = arith.constant 0 : i32
    return %arg0, %c0_i32, %c0_i32_0 : i32, i32, i32
  }
  func.func @transform_2(%arg0: i32) -> (i32, i32, i32) {
    %c0_i32 = arith.constant 0 : i32
    %c0_i32_0 = arith.constant 0 : i32
    %c0_i32_1 = arith.constant 0 : i32
    return %arg0, %c0_i32, %c0_i32_0 : i32, i32, i32
  }
  func.func @transform_3(%arg0: i32) -> (i32, i32, i32) {
    %c0_i32 = arith.constant 0 : i32
    %c0_i32_0 = arith.constant 0 : i32
    %c0_i32_1 = arith.constant 0 : i32
    return %arg0, %c0_i32, %c0_i32_0 : i32, i32, i32
  }
  func.func @transform_4(%arg0: i32) -> (i32, i32, i32) {
    %c0_i32 = arith.constant 0 : i32
    %c0_i32_0 = arith.constant 0 : i32
    %c0_i32_1 = arith.constant 0 : i32
    return %arg0, %c0_i32, %c0_i32_0 : i32, i32, i32
  }
  func.func @transform_5(%arg0: i32) -> (i32, i32, i32) {
    %c0_i32 = arith.constant 0 : i32
    %c0_i32_0 = arith.constant 0 : i32
    %c0_i32_1 = arith.constant 0 : i32
    %c0_i32_2 = arith.constant 0 : i32
    return %c0_i32, %c0_i32_0, %c0_i32_1 : i32, i32, i32
  }
  func.func @transform_6(%arg0: i32) -> (i32, i32, i32) {
    %c0_i32 = arith.constant 0 : i32
    %c0_i32_0 = arith.constant 0 : i32
    %c0_i32_1 = arith.constant 0 : i32
    return %arg0, %c0_i32, %c0_i32_0 : i32, i32, i32
  }
}

</mosaic_0001>

<llo_original>
// kernel: tpu_custom_call.1
$region0: #{tpu_custom_call.1}
  #allocation0 [shape = 'u32[]', space=smem, size = 0x4, offset = 0x4, fixed_abs, tag = 'smem constant byte address 0x4 - core index']
  #allocation1 [shape = 'u32[144,128]{1,0:T(1,128)}', space=vmem, size = 0x12000, scoped, tag = 'internal scratch']
  #allocation2 [shape = 'f32[8,8,384]{2,1,0:T(8,128)}', space=vmem, size = 0x18000, scoped, tag = 'scratch operand']
  %s0 = inlined_call_operand.hbm [shape: f32[8,8,128], index: 0, kind: input, shape index: {}]
  %s1 = inlined_call_operand.hbm [shape: f32[2,128,384], index: 1, kind: input, shape index: {}]
  %s2 = inlined_call_operand.hbm [shape: f32[2,128,384], index: 2, kind: input, shape index: {}]
  %s3 = inlined_call_operand.vmem [shape: f32[2,1,384], index: 3, kind: input, shape index: {}]
  %s4 = inlined_call_operand.vmem [shape: f32[2,1,384], index: 4, kind: input, shape index: {}]
  %s5 = inlined_call_operand.hbm [shape: f32[8,8,128], index: 5, kind: output, shape index: {0}]
  %s6 = inlined_call_operand.hbm [shape: f32[2,8,128], index: 6, kind: output, shape index: {1}]
  %7 = xla_tuple %s5, %s6
  %s8 = sld [smem:[#allocation0]]
  $region73: #{tpu_custom_call.1} parent=0
    _
  %s10 = ssub.s32 1, %s8
  %s11 = scalar_select 0, %s10, %s8
  $region1: #{tpu_custom_call.1} parent=0
    #allocation3 [shape = 'u8[32768]{0}', space=vmem, size = 0x8000, scoped, tag = 'input window, operand 0, single buffered']
    #allocation4 [shape = 's32[2]{0}', space=sflag, size = 0x8, scoped, tag = 'scoped memory for tpu_custom_call.1']
    #allocation5 [shape = 's32[2]{0}', space=sflag, size = 0x8, scoped, tag = 'scoped memory for tpu_custom_call.1']
    #allocation6 [shape = 'u8[393216]{0}', space=vmem, size = 0x60000, scoped, tag = 'input window, operand 1']
    #allocation7 [shape = 's32[2]{0}', space=sflag, size = 0x8, scoped, tag = 'scoped memory for tpu_custom_call.1']
    #allocation8 [shape = 'u8[393216]{0}', space=vmem, size = 0x60000, scoped, tag = 'input window, operand 2']
    #allocation9 [shape = 'u8[32768]{0}', space=vmem, size = 0x8000, scoped, tag = 'output window, operand 0, single buffered']
    #allocation10 [shape = 'u8[8192]{0}', space=vmem, size = 0x2000, scoped, tag = 'output window, operand 1']
    #allocation11 [shape = 's32[2]{0}', space=sflag, size = 0x8, scoped, tag = 'scoped memory for tpu_custom_call.1']
    %12 = vsyncpa [#allocation4], 0
    %13 = vsyncpa [#allocation7], 0
    %s14 = scalar_lea.sflag [#allocation7], 1
    %15 = vsyncpa %s14, 0
    %16 = vsyncpa [#allocation5], 0
    %17 = vsyncpa [#allocation11], 0
    %s18 = scalar_lea.sflag [#allocation11], 1
    %19 = vsyncpa %s18, 0
    loop: start=0, step=1, limit=4
    $region2: #{tpu_custom_call.1} parent=1 // loop_pre_header
      _
    $region3: #{tpu_custom_call.1} parent=1 // loop_header
      %s21 = sphi 0, %s25
      %p22 = scmp.ge.s32.totalorder %s21, 4
      %s29 = sphi 0, %s29
      %s31 = sphi 0, %s29
      %s32 = sphi 0, %s31
      %s46 = sphi 0, %s32
      %s52 = sphi 0, %s54
      %s55 = sphi 0, %s52
      %s56 = sphi 0, %s55
      %s72 = sphi 0, %s56
      %s78 = sphi 0, %s80
      %s81 = sphi 0, %s78
      %s82 = sphi 0, %s81
      %s98 = sphi 0, %s82
      %s104 = sphi 0, %s106
      %s107 = sphi 0, %s104
      %s108 = sphi 0, %s107
      %s124 = sphi 0, %s108
      %s130 = sphi 0, %s132
      %s133 = sphi 0, %s130
      %s134 = sphi 0, %s133
      %s150 = sphi 0, %s134
      %s154 = sphi 0, %s154
      %s156 = sphi 0, %s154
      %s157 = sphi 0, %s156
      %s171 = sphi 0, %s157
      %s177 = sphi 0, %s179
      %s180 = sphi 0, %s177
      %s181 = sphi 0, %s180
      %s197 = sphi 0, %s181
    $region4: #{tpu_custom_call.1} parent=1 // loop_header_branch
      %24 = sbr.rel (%p22) target = $region8
    $region5: #{tpu_custom_call.1} parent=1 // loop_body
      %s26 = ssub.s32 %s21, 1
      %s27 = ssub.s32 %s21, 2
      %s28 = sadd.s32 %s21, 1
      %s30 = sadd.s32 %s29, 1
      %p33 = scmp.eq.s32.totalorder %s21, 1
      %p34 = scmp.ne.s32.totalorder %s29, %s31
      %p35 = scmp.eq.s32.totalorder %s21, 0
      %p36 = por %p34, %p35
      %p37 = scmp.ne.s32.totalorder %s29, %s31
      %p38 = scmp.eq.s32.totalorder %s26, 1
      %p39 = por %p37, %p38
      %p40 = scmp.ne.s32.totalorder %s31, %s32
      %p41 = scmp.eq.s32.totalorder %s26, 0
      %p42 = por %p40, %p41
      %p43 = scmp.ne.s32.totalorder %s31, %s32
      %p44 = scmp.eq.s32.totalorder %s27, 1
      %p45 = por %p43, %p44
      %p47 = scmp.ne.s32.totalorder %s32, %s46
      %p48 = scmp.eq.s32.totalorder %s27, 0
      %p49 = por %p47, %p48
      %s50 = ssub.s32 %s21, %s28
      %p51 = scmp.eq.s32.totalorder %s50, 0
      %s53 = sadd.s32 %s52, 1
      %s54 = scalar_select %p51, %s52, %s53
      %p57 = pneg %p51
      %p58 = scmp.eq.s32.totalorder %s21, 1
      %p59 = por %p57, %p58
      %p60 = scmp.ne.s32.totalorder %s52, %s55
      %p61 = scmp.eq.s32.totalorder %s21, 0
      %p62 = por %p60, %p61
      %p63 = scmp.ne.s32.totalorder %s52, %s55
      %p64 = scmp.eq.s32.totalorder %s26, 1
      %p65 = por %p63, %p64
      %p66 = scmp.ne.s32.totalorder %s55, %s56
      %p67 = scmp.eq.s32.totalorder %s26, 0
      %p68 = por %p66, %p67
      %p69 = scmp.ne.s32.totalorder %s55, %s56
      %p70 = scmp.eq.s32.totalorder %s27, 1
      %p71 = por %p69, %p70
      %p73 = scmp.ne.s32.totalorder %s56, %s72
      %p74 = scmp.eq.s32.totalorder %s27, 0
      %p75 = por %p73, %p74
      %s76 = ssub.s32 %s21, %s28
      %p77 = scmp.eq.s32.totalorder %s76, 0
      %s79 = sadd.s32 %s78, 1
      %s80 = scalar_select %p77, %s78, %s79
      %p83 = pneg %p77
      %p84 = scmp.eq.s32.totalorder %s21, 1
      %p85 = por %p83, %p84
      %p86 = scmp.ne.s32.totalorder %s78, %s81
      %p87 = scmp.eq.s32.totalorder %s21, 0
      %p88 = por %p86, %p87
      %p89 = scmp.ne.s32.totalorder %s78, %s81
      %p90 = scmp.eq.s32.totalorder %s26, 1
      %p91 = por %p89, %p90
      %p92 = scmp.ne.s32.totalorder %s81, %s82
      %p93 = scmp.eq.s32.totalorder %s26, 0
      %p94 = por %p92, %p93
      %p95 = scmp.ne.s32.totalorder %s81, %s82
      %p96 = scmp.eq.s32.totalorder %s27, 1
      %p97 = por %p95, %p96
      %p99 = scmp.ne.s32.totalorder %s82, %s98
      %p100 = scmp.eq.s32.totalorder %s27, 0
      %p101 = por %p99, %p100
      %s102 = ssub.s32 %s21, %s28
      %p103 = scmp.eq.s32.totalorder %s102, 0
      %s105 = sadd.s32 %s104, 1
      %s106 = scalar_select %p103, %s104, %s105
      %p109 = pneg %p103
      %p110 = scmp.eq.s32.totalorder %s21, 1
      %p111 = por %p109, %p110
      %p112 = scmp.ne.s32.totalorder %s104, %s107
      %p113 = scmp.eq.s32.totalorder %s21, 0
      %p114 = por %p112, %p113
      %p115 = scmp.ne.s32.totalorder %s104, %s107
      %p116 = scmp.eq.s32.totalorder %s26, 1
      %p117 = por %p115, %p116
      %p118 = scmp.ne.s32.totalorder %s107, %s108
      %p119 = scmp.eq.s32.totalorder %s26, 0
      %p120 = por %p118, %p119
      %p121 = scmp.ne.s32.totalorder %s107, %s108
      %p122 = scmp.eq.s32.totalorder %s27, 1
      %p123 = por %p121, %p122
      %p125 = scmp.ne.s32.totalorder %s108, %s124
      %p126 = scmp.eq.s32.totalorder %s27, 0
      %p127 = por %p125, %p126
      %s128 = ssub.s32 %s21, %s28
      %p129 = scmp.eq.s32.totalorder %s128, 0
      %s131 = sadd.s32 %s130, 1
      %s132 = scalar_select %p129, %s130, %s131
      %p135 = pneg %p129
      %p136 = scmp.eq.s32.totalorder %s21, 1
      %p137 = por %p135, %p136
      %p138 = scmp.ne.s32.totalorder %s130, %s133
      %p139 = scmp.eq.s32.totalorder %s21, 0
      %p140 = por %p138, %p139
      %p141 = scmp.ne.s32.totalorder %s130, %s133
      %p142 = scmp.eq.s32.totalorder %s26, 1
      %p143 = por %p141, %p142
      %p144 = scmp.ne.s32.totalorder %s133, %s134
      %p145 = scmp.eq.s32.totalorder %s26, 0
      %p146 = por %p144, %p145
      %p147 = scmp.ne.s32.totalorder %s133, %s134
      %p148 = scmp.eq.s32.totalorder %s27, 1
      %p149 = por %p147, %p148
      %p151 = scmp.ne.s32.totalorder %s134, %s150
      %p152 = scmp.eq.s32.totalorder %s27, 0
      %p153 = por %p151, %p152
      %s155 = sadd.s32 %s154, 1
      %p158 = scmp.eq.s32.totalorder %s21, 1
      %p159 = scmp.ne.s32.totalorder %s154, %s156
      %p160 = scmp.eq.s32.totalorder %s21, 0
      %p161 = por %p159, %p160
      %p162 = scmp.ne.s32.totalorder %s154, %s156
      %p163 = scmp.eq.s32.totalorder %s26, 1
      %p164 = por %p162, %p163
      %p165 = scmp.ne.s32.totalorder %s156, %s157
      %p166 = scmp.eq.s32.totalorder %s26, 0
      %p167 = por %p165, %p166
      %p168 = scmp.ne.s32.totalorder %s156, %s157
      %p169 = scmp.eq.s32.totalorder %s27, 1
      %p170 = por %p168, %p169
      %p172 = scmp.ne.s32.totalorder %s157, %s171
      %p173 = scmp.eq.s32.totalorder %s27, 0
      %p174 = por %p172, %p173
      %s175 = ssub.s32 %s21, %s28
      %p176 = scmp.eq.s32.totalorder %s175, 0
      %s178 = sadd.s32 %s177, 1
      %s179 = scalar_select %p176, %s177, %s178
      %p182 = pneg %p176
      %p183 = scmp.eq.s32.totalorder %s21, 1
      %p184 = por %p182, %p183
      %p185 = scmp.ne.s32.totalorder %s177, %s180
      %p186 = scmp.eq.s32.totalorder %s21, 0
      %p187 = por %p185, %p186
      %p188 = scmp.ne.s32.totalorder %s177, %s180
      %p189 = scmp.eq.s32.totalorder %s26, 1
      %p190 = por %p188, %p189
      %p191 = scmp.ne.s32.totalorder %s180, %s181
      %p192 = scmp.eq.s32.totalorder %s26, 0
      %p193 = por %p191, %p192
      %p194 = scmp.ne.s32.totalorder %s180, %s181
      %p195 = scmp.eq.s32.totalorder %s27, 1
      %p196 = por %p194, %p195
      %p198 = scmp.ne.s32.totalorder %s181, %s197
      %p199 = scmp.eq.s32.totalorder %s27, 0
      %p200 = por %p198, %p199
      %p201 = scmp.le.s32.totalorder 1, %s21
      %p202 = scmp.lt.s32.totalorder %s21, 3
      %p203 = pnand %p201, %p202
      %p204 = pneg %p203
      // Predicated region
      $region9: #{tpu_custom_call.1} parent=5 // pred_check
        _
      $region10: #{tpu_custom_call.1} parent=5 // pred_check_branch
        %206 = sbr.rel (%p203) target = $region12
      $region11: #{tpu_custom_call.1} parent=5 // pred_region
        %s207 = ssub.s32 %s21, 1
        // Predicated region
        $region13: #{tpu_custom_call.1} parent=11 // pred_check
          %p208 = pneg %p42
        $region14: #{tpu_custom_call.1} parent=11 // pred_check_branch
          %210 = sbr.rel (%p208) target = $region16
        $region15: #{tpu_custom_call.1} parent=11 // pred_region
          %s212 = ssub.s32 1024, 1024
          %213 = vsyncadd [#allocation4], %s212
          %s214 = sshll.u32 [#allocation3], 4
          %s215 = int_to_ptr.vmem [resolvable:$true] %s214
          %220 = dma.hbm_to_vmem [thread:$0]  %s0, 1024, %s215, [#allocation4], 128, 128, 8
        $region16: #{tpu_custom_call.1} parent=11 // pred_fallthru
          _
      $region12: #{tpu_custom_call.1} parent=5 // pred_fallthru
        _
      %p221 = scmp.lt.s32.totalorder %s21, 2
      // Predicated region
      $region17: #{tpu_custom_call.1} parent=5 // pred_check
        %p222 = pneg %p221
      $region18: #{tpu_custom_call.1} parent=5 // pred_check_branch
        %224 = sbr.rel (%p222) target = $region20
      $region19: #{tpu_custom_call.1} parent=5 // pred_region
        // Predicated region
        $region21: #{tpu_custom_call.1} parent=19 // pred_check
          %p225 = pneg %p62
        $region22: #{tpu_custom_call.1} parent=19 // pred_check_branch
          %227 = sbr.rel (%p225) target = $region24
        $region23: #{tpu_custom_call.1} parent=19 // pred_region
          %s228 = sand.u32 %s21, 1
          %s229 = scalar_lea.sflag [#allocation7], %s228
          %s230 = sand.u32 %s52, 1
          %s231 = smul.addr %s230, 384
          %s232 = scalar_lea.vmem [#allocation6], %s231
          %s234 = ssub.s32 6144, 6144
          %235 = vsyncadd %s229, %s234
          %s236 = smul.addr %s21, 48
          %s237 = smul.addr %s236, 128
          %s238 = scalar_lea.hbm %s1, %s237
          %s239 = sshll.u32 %s232, 4
          %s240 = int_to_ptr.vmem [resolvable:$true] %s239
          %245 = dma.hbm_to_vmem [thread:$0]  %s238, 6144, %s240, %s229, 384, 384, 24
        $region24: #{tpu_custom_call.1} parent=19 // pred_fallthru
          _
        // Predicated region
        $region25: #{tpu_custom_call.1} parent=19 // pred_check
          %p246 = pneg %p88
        $region26: #{tpu_custom_call.1} parent=19 // pred_check_branch
          %248 = sbr.rel (%p246) target = $region28
        $region27: #{tpu_custom_call.1} parent=19 // pred_region
          %s249 = sand.u32 %s21, 1
          %s250 = scalar_lea.sflag [#allocation7], %s249
          %s251 = sand.u32 %s78, 1
          %s252 = smul.addr %s251, 384
          %s253 = scalar_lea.vmem [#allocation8], %s252
          %s255 = ssub.s32 6144, 6144
          %256 = vsyncadd %s250, %s255
          %s257 = smul.addr %s21, 48
          %s258 = smul.addr %s257, 128
          %s259 = scalar_lea.hbm %s2, %s258
          %s260 = sshll.u32 %s253, 4
          %s261 = int_to_ptr.vmem [resolvable:$true] %s260
          %266 = dma.hbm_to_vmem [thread:$0]  %s259, 6144, %s261, %s250, 384, 384, 24
        $region28: #{tpu_custom_call.1} parent=19 // pred_fallthru
          _
        // Predicated region
        $region29: #{tpu_custom_call.1} parent=19 // pred_check
          %p267 = pneg %p114
        $region30: #{tpu_custom_call.1} parent=19 // pred_check_branch
          %269 = sbr.rel (%p267) target = $region32
        $region31: #{tpu_custom_call.1} parent=19 // pred_region
          %p270 = scmp.lt.s32.totalorder %s21, 1
          %s271 = scalar_select %p270, %s21, 1
          %s272 = smul.addr %s271, 3
          %s273 = scalar_lea.vmem %s3, %s272
        $region32: #{tpu_custom_call.1} parent=19 // pred_fallthru
          _
        // Predicated region
        $region33: #{tpu_custom_call.1} parent=19 // pred_check
          %p274 = pneg %p140
        $region34: #{tpu_custom_call.1} parent=19 // pred_check_branch
          %276 = sbr.rel (%p274) target = $region36
        $region35: #{tpu_custom_call.1} parent=19 // pred_region
          %p277 = scmp.lt.s32.totalorder %s21, 1
          %s278 = scalar_select %p277, %s21, 1
          %s279 = smul.addr %s278, 3
          %s280 = scalar_lea.vmem %s4, %s279
        $region36: #{tpu_custom_call.1} parent=19 // pred_fallthru
          _
      $region20: #{tpu_custom_call.1} parent=5 // pred_fallthru
        _
      %p281 = scmp.le.s32.totalorder 1, %s21
      %p282 = scmp.lt.s32.totalorder %s21, 3
      %p283 = pnand %p281, %p282
      %p284 = pneg %p283
      // Predicated region
      $region37: #{tpu_custom_call.1} parent=5 // pred_check
        _
      $region38: #{tpu_custom_call.1} parent=5 // pred_check_branch
        %286 = sbr.rel (%p283) target = $region40
      $region39: #{tpu_custom_call.1} parent=5 // pred_region
        %s287 = ssub.s32 %s21, 1
        // Predicated region
        $region41: #{tpu_custom_call.1} parent=39 // pred_check
          %p288 = pneg %p42
        $region42: #{tpu_custom_call.1} parent=39 // pred_check_branch
          %290 = sbr.rel (%p288) target = $region44
        $region43: #{tpu_custom_call.1} parent=39 // pred_region
          %291 = dma.done [#allocation4], 1024
        $region44: #{tpu_custom_call.1} parent=39 // pred_fallthru
          _
        %s292 = sand.u32 %s26, 1
        %s293 = scalar_lea.sflag [#allocation7], %s292
        %s294 = sand.u32 %s55, 1
        %s295 = smul.addr %s294, 384
        %s296 = scalar_lea.vmem [#allocation6], %s295
        // Predicated region
        $region45: #{tpu_custom_call.1} parent=39 // pred_check
          %p297 = pneg %p68
        $region46: #{tpu_custom_call.1} parent=39 // pred_check_branch
          %299 = sbr.rel (%p297) target = $region48
        $region47: #{tpu_custom_call.1} parent=39 // pred_region
          %300 = dma.done %s293, 6144
        $region48: #{tpu_custom_call.1} parent=39 // pred_fallthru
          _
        %s301 = sand.u32 %s26, 1
        %s302 = scalar_lea.sflag [#allocation7], %s301
        %s303 = sand.u32 %s81, 1
        %s304 = smul.addr %s303, 384
        %s305 = scalar_lea.vmem [#allocation8], %s304
        // Predicated region
        $region49: #{tpu_custom_call.1} parent=39 // pred_check
          %p306 = pneg %p94
        $region50: #{tpu_custom_call.1} parent=39 // pred_check_branch
          %308 = sbr.rel (%p306) target = $region52
        $region51: #{tpu_custom_call.1} parent=39 // pred_region
          %309 = dma.done %s302, 6144
        $region52: #{tpu_custom_call.1} parent=39 // pred_fallthru
          _
        %p310 = pneg %p42
        %p311 = pneg %p39
        %s312 = sand.u32 %s26, 1
        %s313 = scalar_lea.sflag [#allocation7], %s312
        %s314 = sand.u32 %s55, 1
        %s315 = smul.addr %s314, 384
        %s316 = scalar_lea.vmem [#allocation6], %s315
        %p317 = pneg %p68
        %p318 = pneg %p65
        %s319 = sand.u32 %s26, 1
        %s320 = scalar_lea.sflag [#allocation7], %s319
        %s321 = sand.u32 %s81, 1
        %s322 = smul.addr %s321, 384
        %s323 = scalar_lea.vmem [#allocation8], %s322
        %p324 = pneg %p94
        %p325 = pneg %p91
        %p326 = scmp.lt.s32.totalorder %s26, 1
        %s327 = scalar_select %p326, %s26, 1
        %s328 = smul.addr %s327, 3
        %s329 = scalar_lea.vmem %s3, %s328
        %p330 = pneg %p120
        %p331 = pneg %p117
        %p332 = scmp.lt.s32.totalorder %s26, 1
        %s333 = scalar_select %p332, %s26, 1
        %s334 = smul.addr %s333, 3
        %s335 = scalar_lea.vmem %s4, %s334
        %p336 = pneg %p146
        %p337 = pneg %p143
        %p338 = pneg %p167
        %p339 = pneg %p164
        %p340 = pneg %p193
        %p341 = pneg %p190
        %s342 = sand.u32 %s180, 1
        %s343 = scalar_lea.sflag [#allocation11], %s342
        %s344 = sand.u32 %s180, 1
        %s345 = smul.addr %s344, 8
        %s346 = scalar_lea.vmem [#allocation10], %s345
        %p347 = scmp.lt.s32.totalorder %s26, 1
        %s348 = scalar_select %p347, %s26, 1
        %s349 = smul.addr %s348, 3
        %s350 = scalar_lea.vmem %s3, %s349
        %p351 = scmp.lt.s32.totalorder %s26, 1
        %s352 = scalar_select %p351, %s26, 1
        %s353 = smul.addr %s352, 3
        %s354 = scalar_lea.vmem %s4, %s353
        %v355 = vld [vmem:[%s296] sm:$0xff]
        %v356 = vld [vmem:[%s296 + $0x8] sm:$0xff]
        %v357 = vld [vmem:[%s296 + $0x10] sm:$0xff]
        %v358 = vld [vmem:[%s296 + $0x18] sm:$0xff]
        %v359 = vld [vmem:[%s296 + $0x20] sm:$0xff]
        %v360 = vld [vmem:[%s296 + $0x28] sm:$0xff]
        %v361 = vld [vmem:[%s296 + $0x30] sm:$0xff]
        %v362 = vld [vmem:[%s296 + $0x38] sm:$0xff]
        %v363 = vld [vmem:[%s296 + $0x40] sm:$0xff]
        %v364 = vld [vmem:[%s296 + $0x48] sm:$0xff]
        %v365 = vld [vmem:[%s296 + $0x50] sm:$0xff]
        %v366 = vld [vmem:[%s296 + $0x58] sm:$0xff]
        %v367 = vld [vmem:[%s296 + $0x60] sm:$0xff]
        %v368 = vld [vmem:[%s296 + $0x68] sm:$0xff]
        %v369 = vld [vmem:[%s296 + $0x70] sm:$0xff]
        %v370 = vld [vmem:[%s296 + $0x78] sm:$0xff]
        %v371 = vld [vmem:[%s296 + $0x80] sm:$0xff]
        %v372 = vld [vmem:[%s296 + $0x88] sm:$0xff]
        %v373 = vld [vmem:[%s296 + $0x90] sm:$0xff]
        %v374 = vld [vmem:[%s296 + $0x98] sm:$0xff]
        %v375 = vld [vmem:[%s296 + $0xa0] sm:$0xff]
        %v376 = vld [vmem:[%s296 + $0xa8] sm:$0xff]
        %v377 = vld [vmem:[%s296 + $0xb0] sm:$0xff]
        %v378 = vld [vmem:[%s296 + $0xb8] sm:$0xff]
        %v379 = vld [vmem:[%s296 + $0xc0] sm:$0xff]
        %v380 = vld [vmem:[%s296 + $0xc8] sm:$0xff]
        %v381 = vld [vmem:[%s296 + $0xd0] sm:$0xff]
        %v382 = vld [vmem:[%s296 + $0xd8] sm:$0xff]
        %v383 = vld [vmem:[%s296 + $0xe0] sm:$0xff]
        %v384 = vld [vmem:[%s296 + $0xe8] sm:$0xff]
        %v385 = vld [vmem:[%s296 + $0xf0] sm:$0xff]
        %v386 = vld [vmem:[%s296 + $0xf8] sm:$0xff]
        %v387 = vld [vmem:[%s296 + $0x100] sm:$0xff]
        %v388 = vld [vmem:[%s296 + $0x108] sm:$0xff]
        %v389 = vld [vmem:[%s296 + $0x110] sm:$0xff]
        %v390 = vld [vmem:[%s296 + $0x118] sm:$0xff]
        %v391 = vld [vmem:[%s296 + $0x120] sm:$0xff]
        %v392 = vld [vmem:[%s296 + $0x128] sm:$0xff]
        %v393 = vld [vmem:[%s296 + $0x130] sm:$0xff]
        %v394 = vld [vmem:[%s296 + $0x138] sm:$0xff]
        %v395 = vld [vmem:[%s296 + $0x140] sm:$0xff]
        %v396 = vld [vmem:[%s296 + $0x148] sm:$0xff]
        %v397 = vld [vmem:[%s296 + $0x150] sm:$0xff]
        %v398 = vld [vmem:[%s296 + $0x158] sm:$0xff]
        %v399 = vld [vmem:[%s296 + $0x160] sm:$0xff]
        %v400 = vld [vmem:[%s296 + $0x168] sm:$0xff]
        %v401 = vld [vmem:[%s296 + $0x170] sm:$0xff]
        %v402 = vld [vmem:[%s296 + $0x178] sm:$0xff]
        %v403 = vld [vmem:[%s305] sm:$0xff]
        %v404 = vld [vmem:[%s305 + $0x8] sm:$0xff]
        %v405 = vld [vmem:[%s305 + $0x10] sm:$0xff]
        %v406 = vld [vmem:[%s305 + $0x18] sm:$0xff]
        %v407 = vld [vmem:[%s305 + $0x20] sm:$0xff]
        %v408 = vld [vmem:[%s305 + $0x28] sm:$0xff]
        %v409 = vld [vmem:[%s305 + $0x30] sm:$0xff]
        %v410 = vld [vmem:[%s305 + $0x38] sm:$0xff]
        %v411 = vld [vmem:[%s305 + $0x40] sm:$0xff]
        %v412 = vld [vmem:[%s305 + $0x48] sm:$0xff]
        %v413 = vld [vmem:[%s305 + $0x50] sm:$0xff]
        %v414 = vld [vmem:[%s305 + $0x58] sm:$0xff]
        %v415 = vld [vmem:[%s305 + $0x60] sm:$0xff]
        %v416 = vld [vmem:[%s305 + $0x68] sm:$0xff]
        %v417 = vld [vmem:[%s305 + $0x70] sm:$0xff]
        %v418 = vld [vmem:[%s305 + $0x78] sm:$0xff]
        %v419 = vld [vmem:[%s305 + $0x80] sm:$0xff]
        %v420 = vld [vmem:[%s305 + $0x88] sm:$0xff]
        %v421 = vld [vmem:[%s305 + $0x90] sm:$0xff]
        %v422 = vld [vmem:[%s305 + $0x98] sm:$0xff]
        %v423 = vld [vmem:[%s305 + $0xa0] sm:$0xff]
        %v424 = vld [vmem:[%s305 + $0xa8] sm:$0xff]
        %v425 = vld [vmem:[%s305 + $0xb0] sm:$0xff]
        %v426 = vld [vmem:[%s305 + $0xb8] sm:$0xff]
        %v427 = vld [vmem:[%s305 + $0xc0] sm:$0xff]
        %v428 = vld [vmem:[%s305 + $0xc8] sm:$0xff]
        %v429 = vld [vmem:[%s305 + $0xd0] sm:$0xff]
        %v430 = vld [vmem:[%s305 + $0xd8] sm:$0xff]
        %v431 = vld [vmem:[%s305 + $0xe0] sm:$0xff]
        %v432 = vld [vmem:[%s305 + $0xe8] sm:$0xff]
        %v433 = vld [vmem:[%s305 + $0xf0] sm:$0xff]
        %v434 = vld [vmem:[%s305 + $0xf8] sm:$0xff]
        %v435 = vld [vmem:[%s305 + $0x100] sm:$0xff]
        %v436 = vld [vmem:[%s305 + $0x108] sm:$0xff]
        %v437 = vld [vmem:[%s305 + $0x110] sm:$0xff]
        %v438 = vld [vmem:[%s305 + $0x118] sm:$0xff]
        %v439 = vld [vmem:[%s305 + $0x120] sm:$0xff]
        %v440 = vld [vmem:[%s305 + $0x128] sm:$0xff]
        %v441 = vld [vmem:[%s305 + $0x130] sm:$0xff]
        %v442 = vld [vmem:[%s305 + $0x138] sm:$0xff]
        %v443 = vld [vmem:[%s305 + $0x140] sm:$0xff]
        %v444 = vld [vmem:[%s305 + $0x148] sm:$0xff]
        %v445 = vld [vmem:[%s305 + $0x150] sm:$0xff]
        %v446 = vld [vmem:[%s305 + $0x158] sm:$0xff]
        %v447 = vld [vmem:[%s305 + $0x160] sm:$0xff]
        %v448 = vld [vmem:[%s305 + $0x168] sm:$0xff]
        %v449 = vld [vmem:[%s305 + $0x170] sm:$0xff]
        %v450 = vld [vmem:[%s305 + $0x178] sm:$0xff]
        %v451 = vld [vmem:[%s350] sm:$0x7]
        %v452 = vld [vmem:[%s354] sm:$0x7]
        %v454 = vlaneseq
        %v455 = vshrl.u32 %v454, 7
        %v456 = vsub.s32 0, %v455
        %v457 = vrot.slane %v452, %v456
        %v458 = vlaneseq
        %v459 = vshrl.u32 %v458, 7
        %v460 = vsub.s32 1, %v459
        %v461 = vrot.slane %v452, %v460
        %v462 = vlaneseq
        %v463 = vshrl.u32 %v462, 7
        %v464 = vsub.s32 2, %v463
        %v465 = vrot.slane %v452, %v464
        %p469 = scmp.eq.s32.totalorder %s26, 0
        %v470 = vld [vmem:[#allocation3] sm:$0xff]
        %v471 = vld [vmem:[#allocation3 + $0x8] sm:$0xff]
        %v472 = vld [vmem:[#allocation3 + $0x10] sm:$0xff]
        %v473 = vld [vmem:[#allocation3 + $0x18] sm:$0xff]
        %v474 = vld [vmem:[#allocation3 + $0x20] sm:$0xff]
        %v475 = vld [vmem:[#allocation3 + $0x28] sm:$0xff]
        %v476 = vld [vmem:[#allocation3 + $0x30] sm:$0xff]
        %v477 = vld [vmem:[#allocation3 + $0x38] sm:$0xff]
        %v478 = vld [vmem:[#allocation9] sm:$0xff]
        %v479 = vld [vmem:[#allocation9 + $0x8] sm:$0xff]
        %v480 = vld [vmem:[#allocation9 + $0x10] sm:$0xff]
        %v481 = vld [vmem:[#allocation9 + $0x18] sm:$0xff]
        %v482 = vld [vmem:[#allocation9 + $0x20] sm:$0xff]
        %v483 = vld [vmem:[#allocation9 + $0x28] sm:$0xff]
        %v484 = vld [vmem:[#allocation9 + $0x30] sm:$0xff]
        %v485 = vld [vmem:[#allocation9 + $0x38] sm:$0xff]
        %s486 = scalar_select %p469, 1, 0
        %v487 = vstv %s486
        %vm488 = vcmp.eq.s32.totalorder %v487, 1
        %v489 = vsel %vm488, %v470, %v478
        %v490 = vsel %vm488, %v471, %v479
        %v491 = vsel %vm488, %v472, %v480
        %v492 = vsel %vm488, %v473, %v481
        %v493 = vsel %vm488, %v474, %v482
        %v494 = vsel %vm488, %v475, %v483
        %v495 = vsel %vm488, %v476, %v484
        %v496 = vsel %vm488, %v477, %v485
        %v498 = vlaneseq
        %v499 = vshrl.u32 %v498, 7
        %v500 = vsub.s32 0, %v499
        %v501 = vrot.slane %v451, %v500
        %v502 = vlaneseq
        %v503 = vshrl.u32 %v502, 7
        %v504 = vsub.s32 1, %v503
        %v505 = vrot.slane %v451, %v504
        %v506 = vlaneseq
        %v507 = vshrl.u32 %v506, 7
        %v508 = vsub.s32 2, %v507
        %v509 = vrot.slane %v451, %v508
        %513 = vmatprep.subr.mxu0 %v356
        %514 = vmatpush1.msra.mxu0 %v355
        %515 = vmatprep.subr.mxu0 %v359
        %516 = vmatpush1.msra.mxu0 %v358
        %517 = vmatprep.subr.mxu0 %v362
        %518 = vmatpush1.msra.mxu0 %v361
        %519 = vmatprep.subr.mxu0 %v365
        %520 = vmatpush1.msra.mxu0 %v364
        %521 = vmatprep.subr.mxu0 %v368
        %522 = vmatpush1.msra.mxu0 %v367
        %523 = vmatprep.subr.mxu0 %v371
        %524 = vmatpush1.msra.mxu0 %v370
        %525 = vmatprep.subr.mxu0 %v374
        %526 = vmatpush1.msra.mxu0 %v373
        %527 = vmatprep.subr.mxu0 %v377
        %528 = vmatpush1.msra.mxu0 %v376
        %529 = vmatprep.subr.mxu0 %v380
        %530 = vmatpush1.msra.mxu0 %v379
        %531 = vmatprep.subr.mxu0 %v383
        %532 = vmatpush1.msra.mxu0 %v382
        %533 = vmatprep.subr.mxu0 %v386
        %534 = vmatpush1.msra.mxu0 %v385
        %535 = vmatprep.subr.mxu0 %v389
        %536 = vmatpush1.msra.mxu0 %v388
        %537 = vmatprep.subr.mxu0 %v392
        %538 = vmatpush1.msra.mxu0 %v391
        %539 = vmatprep.subr.mxu0 %v395
        %540 = vmatpush1.msra.mxu0 %v394
        %541 = vmatprep.subr.mxu0 %v398
        %542 = vmatpush1.msra.mxu0 %v397
        %543 = vmatprep.subr.mxu0 %v401
        %544 = vmatpush1.msra.mxu0 %v400
        %545 = vmatprep.subr.mxu0 0.0
        %546 = vmatpush1.msra.mxu0 0.0
        %547 = vmatprep.subr.mxu0 0.0
        %548 = vmatpush1.msra.mxu0 0.0
        %549 = vmatprep.subr.mxu0 0.0
        %550 = vmatpush1.msra.mxu0 0.0
        %551 = vmatprep.subr.mxu0 0.0
        %552 = vmatpush1.msra.mxu0 0.0
        %553 = vmatprep.subr.mxu0 0.0
        %554 = vmatpush1.msra.mxu0 0.0
        %555 = vmatprep.subr.mxu0 0.0
        %556 = vmatpush1.msra.mxu0 0.0
        %557 = vmatprep.subr.mxu0 0.0
        %558 = vmatpush1.msra.mxu0 0.0
        %559 = vmatprep.subr.mxu0 0.0
        %560 = vmatpush1.msra.mxu0 0.0
        %561 = vmatprep.subr.mxu0 0.0
        %562 = vmatpush1.msra.mxu0 0.0
        %563 = vmatprep.subr.mxu0 0.0
        %564 = vmatpush1.msra.mxu0 0.0
        %565 = vmatprep.subr.mxu0 0.0
        %566 = vmatpush1.msra.mxu0 0.0
        %567 = vmatprep.subr.mxu0 0.0
        %568 = vmatpush1.msra.mxu0 0.0
        %569 = vmatprep.subr.mxu0 0.0
        %570 = vmatpush1.msra.mxu0 0.0
        %571 = vmatprep.subr.mxu0 0.0
        %572 = vmatpush1.msra.mxu0 0.0
        %573 = vmatprep.subr.mxu0 0.0
        %574 = vmatpush1.msra.mxu0 0.0
        %575 = vmatprep.subr.mxu0 0.0
        %576 = vmatpush1.msra.mxu0 0.0
        %577 = vmatprep.mubr.f32.mxu0 0.0
        %578 = vmatmul.mubr.f32.gmra.mrb[0].mxu0 %v489
        %v579 = vpop.f32.mrb[0].mxu0
        %v580 = vadd.f32 %v501, %v579
        %v581 = vpop.f32.mrb[0].mxu0
        %v582 = vadd.f32 %v505, %v581
        %583 = vmatprep.mubr.f32.mxu0 0.0
        %584 = vmatmul.mubr.f32.gmra.mrb[0].mxu0 %v490
        %v585 = vpop.f32.mrb[0].mxu0
        %v586 = vadd.f32 %v501, %v585
        %v587 = vpop.f32.mrb[0].mxu0
        %v588 = vadd.f32 %v505, %v587
        %589 = vmatprep.mubr.f32.mxu0 0.0
        %590 = vmatmul.mubr.f32.gmra.mrb[0].mxu0 %v491
        %v591 = vpop.f32.mrb[0].mxu0
        %v592 = vadd.f32 %v501, %v591
        %v593 = vpop.f32.mrb[0].mxu0
        %v594 = vadd.f32 %v505, %v593
        %595 = vmatprep.mubr.f32.mxu0 0.0
        %596 = vmatmul.mubr.f32.gmra.mrb[0].mxu0 %v492
        %v597 = vpop.f32.mrb[0].mxu0
        %v598 = vadd.f32 %v501, %v597
        %v599 = vpop.f32.mrb[0].mxu0
        %v600 = vadd.f32 %v505, %v599
        %601 = vmatprep.mubr.f32.mxu0 0.0
        %602 = vmatmul.mubr.f32.gmra.mrb[0].mxu0 %v493
        %v603 = vpop.f32.mrb[0].mxu0
        %v604 = vadd.f32 %v501, %v603
        %v605 = vpop.f32.mrb[0].mxu0
        %v606 = vadd.f32 %v505, %v605
        %607 = vmatprep.mubr.f32.mxu0 0.0
        %608 = vmatmul.mubr.f32.gmra.mrb[0].mxu0 %v494
        %v609 = vpop.f32.mrb[0].mxu0
        %v610 = vadd.f32 %v501, %v609
        %v611 = vpop.f32.mrb[0].mxu0
        %v612 = vadd.f32 %v505, %v611
        %613 = vmatprep.mubr.f32.mxu0 0.0
        %614 = vmatmul.mubr.f32.gmra.mrb[0].mxu0 %v495
        %v615 = vpop.f32.mrb[0].mxu0
        %v616 = vadd.f32 %v501, %v615
        %v617 = vpop.f32.mrb[0].mxu0
        %v618 = vadd.f32 %v505, %v617
        %619 = vmatprep.mubr.f32.mxu0 0.0
        %620 = vmatmul.mubr.f32.gmra.mrb[0].mxu0 %v496
        %v621 = vpop.f32.mrb[0].mxu0
        %v622 = vadd.f32 %v501, %v621
        %v623 = vpop.f32.mrb[0].mxu0
        %v624 = vadd.f32 %v505, %v623
        %625 = vdwg.mxu0
        %626 = vmatprep.subr.mxu0 0.0
        %627 = vmatpush1.msra.mxu0 %v357
        %628 = vmatprep.subr.mxu0 0.0
        %629 = vmatpush1.msra.mxu0 %v360
        %630 = vmatprep.subr.mxu0 0.0
        %631 = vmatpush1.msra.mxu0 %v363
        %632 = vmatprep.subr.mxu0 0.0
        %633 = vmatpush1.msra.mxu0 %v366
        %634 = vmatprep.subr.mxu0 0.0
        %635 = vmatpush1.msra.mxu0 %v369
        %636 = vmatprep.subr.mxu0 0.0
        %637 = vmatpush1.msra.mxu0 %v372
        %638 = vmatprep.subr.mxu0 0.0
        %639 = vmatpush1.msra.mxu0 %v375
        %640 = vmatprep.subr.mxu0 0.0
        %641 = vmatpush1.msra.mxu0 %v378
        %642 = vmatprep.subr.mxu0 0.0
        %643 = vmatpush1.msra.mxu0 %v381
        %644 = vmatprep.subr.mxu0 0.0
        %645 = vmatpush1.msra.mxu0 %v384
        %646 = vmatprep.subr.mxu0 0.0
        %647 = vmatpush1.msra.mxu0 %v387
        %648 = vmatprep.subr.mxu0 0.0
        %649 = vmatpush1.msra.mxu0 %v390
        %650 = vmatprep.subr.mxu0 0.0
        %651 = vmatpush1.msra.mxu0 %v393
        %652 = vmatprep.subr.mxu0 0.0
        %653 = vmatpush1.msra.mxu0 %v396
        %654 = vmatprep.subr.mxu0 0.0
        %655 = vmatpush1.msra.mxu0 %v399
        %656 = vmatprep.subr.mxu0 0.0
        %657 = vmatpush1.msra.mxu0 %v402
        %658 = vmatprep.subr.mxu0 0.0
        %659 = vmatpush1.msra.mxu0 0.0
        %660 = vmatprep.subr.mxu0 0.0
        %661 = vmatpush1.msra.mxu0 0.0
        %662 = vmatprep.subr.mxu0 0.0
        %663 = vmatpush1.msra.mxu0 0.0
        %664 = vmatprep.subr.mxu0 0.0
        %665 = vmatpush1.msra.mxu0 0.0
        %666 = vmatprep.subr.mxu0 0.0
        %667 = vmatpush1.msra.mxu0 0.0
        %668 = vmatprep.subr.mxu0 0.0
        %669 = vmatpush1.msra.mxu0 0.0
        %670 = vmatprep.subr.mxu0 0.0
        %671 = vmatpush1.msra.mxu0 0.0
        %672 = vmatprep.subr.mxu0 0.0
        %673 = vmatpush1.msra.mxu0 0.0
        %674 = vmatprep.subr.mxu0 0.0
        %675 = vmatpush1.msra.mxu0 0.0
        %676 = vmatprep.subr.mxu0 0.0
        %677 = vmatpush1.msra.mxu0 0.0
        %678 = vmatprep.subr.mxu0 0.0
        %679 = vmatpush1.msra.mxu0 0.0
        %680 = vmatprep.subr.mxu0 0.0
        %681 = vmatpush1.msra.mxu0 0.0
        %682 = vmatprep.subr.mxu0 0.0
        %683 = vmatpush1.msra.mxu0 0.0
        %684 = vmatprep.subr.mxu0 0.0
        %685 = vmatpush1.msra.mxu0 0.0
        %686 = vmatprep.subr.mxu0 0.0
        %687 = vmatpush1.msra.mxu0 0.0
        %688 = vmatprep.subr.mxu0 0.0
        %689 = vmatpush1.msra.mxu0 0.0
        %690 = vmatprep.mubr.f32.mxu0 0.0
        %691 = vmatmul.mubr.f32.gmra.mrb[0].mxu0 %v489
        %v692 = vpop.f32.mrb[0].mxu0
        %v693 = vadd.f32 %v509, %v692
        %v694 = vpop.f32.mrb[0].mxu0
        %695 = vmatprep.mubr.f32.mxu0 0.0
        %696 = vmatmul.mubr.f32.gmra.mrb[0].mxu0 %v490
        %v697 = vpop.f32.mrb[0].mxu0
        %v698 = vadd.f32 %v509, %v697
        %v699 = vpop.f32.mrb[0].mxu0
        %700 = vmatprep.mubr.f32.mxu0 0.0
        %701 = vmatmul.mubr.f32.gmra.mrb[0].mxu0 %v491
        %v702 = vpop.f32.mrb[0].mxu0
        %v703 = vadd.f32 %v509, %v702
        %v704 = vpop.f32.mrb[0].mxu0
        %705 = vmatprep.mubr.f32.mxu0 0.0
        %706 = vmatmul.mubr.f32.gmra.mrb[0].mxu0 %v492
        %v707 = vpop.f32.mrb[0].mxu0
        %v708 = vadd.f32 %v509, %v707
        %v709 = vpop.f32.mrb[0].mxu0
        %710 = vmatprep.mubr.f32.mxu0 0.0
        %711 = vmatmul.mubr.f32.gmra.mrb[0].mxu0 %v493
        %v712 = vpop.f32.mrb[0].mxu0
        %v713 = vadd.f32 %v509, %v712
        %v714 = vpop.f32.mrb[0].mxu0
        %715 = vmatprep.mubr.f32.mxu0 0.0
        %716 = vmatmul.mubr.f32.gmra.mrb[0].mxu0 %v494
        %v717 = vpop.f32.mrb[0].mxu0
        %v718 = vadd.f32 %v509, %v717
        %v719 = vpop.f32.mrb[0].mxu0
        %720 = vmatprep.mubr.f32.mxu0 0.0
        %721 = vmatmul.mubr.f32.gmra.mrb[0].mxu0 %v495
        %v722 = vpop.f32.mrb[0].mxu0
        %v723 = vadd.f32 %v509, %v722
        %v724 = vpop.f32.mrb[0].mxu0
        %725 = vmatprep.mubr.f32.mxu0 0.0
        %726 = vmatmul.mubr.f32.gmra.mrb[0].mxu0 %v496
        %v727 = vpop.f32.mrb[0].mxu0
        %v728 = vadd.f32 %v509, %v727
        %v729 = vpop.f32.mrb[0].mxu0
        %730 = vdwg.mxu0
        %731 = vst [vmem:[#allocation2] sm:$0xff] %v580
        %732 = vst [vmem:[#allocation2 + $0x8] sm:$0xff] %v582
        %733 = vst [vmem:[#allocation2 + $0x10] sm:$0xff] %v693
        %734 = vst [vmem:[#allocation2 + $0x18] sm:$0xff] %v586
        %735 = vst [vmem:[#allocation2 + $0x20] sm:$0xff] %v588
        %736 = vst [vmem:[#allocation2 + $0x28] sm:$0xff] %v698
        %737 = vst [vmem:[#allocation2 + $0x30] sm:$0xff] %v592
        %738 = vst [vmem:[#allocation2 + $0x38] sm:$0xff] %v594
        %739 = vst [vmem:[#allocation2 + $0x40] sm:$0xff] %v703
        %740 = vst [vmem:[#allocation2 + $0x48] sm:$0xff] %v598
        %741 = vst [vmem:[#allocation2 + $0x50] sm:$0xff] %v600
        %742 = vst [vmem:[#allocation2 + $0x58] sm:$0xff] %v708
        %743 = vst [vmem:[#allocation2 + $0x60] sm:$0xff] %v604
        %744 = vst [vmem:[#allocation2 + $0x68] sm:$0xff] %v606
        %745 = vst [vmem:[#allocation2 + $0x70] sm:$0xff] %v713
        %746 = vst [vmem:[#allocation2 + $0x78] sm:$0xff] %v610
        %747 = vst [vmem:[#allocation2 + $0x80] sm:$0xff] %v612
        %748 = vst [vmem:[#allocation2 + $0x88] sm:$0xff] %v718
        %749 = vst [vmem:[#allocation2 + $0x90] sm:$0xff] %v616
        %750 = vst [vmem:[#allocation2 + $0x98] sm:$0xff] %v618
        %751 = vst [vmem:[#allocation2 + $0xa0] sm:$0xff] %v723
        %752 = vst [vmem:[#allocation2 + $0xa8] sm:$0xff] %v622
        %753 = vst [vmem:[#allocation2 + $0xb0] sm:$0xff] %v624
        %754 = vst [vmem:[#allocation2 + $0xb8] sm:$0xff] %v728
        %v755 = vld [vmem:[#allocation2] sm:$0xff]
        %v756 = vld [vmem:[#allocation2 + $0x8] sm:$0xff]
        %v757 = vld [vmem:[#allocation2 + $0x10] sm:$0xff]
        %758 = vmatprep.subr.mxu0 %v404
        %759 = vmatpush1.msra.mxu0 %v403
        %760 = vmatprep.subr.mxu0 %v407
        %761 = vmatpush1.msra.mxu0 %v406
        %762 = vmatprep.subr.mxu0 %v410
        %763 = vmatpush1.msra.mxu0 %v409
        %764 = vmatprep.subr.mxu0 %v413
        %765 = vmatpush1.msra.mxu0 %v412
        %766 = vmatprep.subr.mxu0 %v416
        %767 = vmatpush1.msra.mxu0 %v415
        %768 = vmatprep.subr.mxu0 %v419
        %769 = vmatpush1.msra.mxu0 %v418
        %770 = vmatprep.subr.mxu0 %v422
        %771 = vmatpush1.msra.mxu0 %v421
        %772 = vmatprep.subr.mxu0 %v425
        %773 = vmatpush1.msra.mxu0 %v424
        %774 = vmatprep.subr.mxu0 %v428
        %775 = vmatpush1.msra.mxu0 %v427
        %776 = vmatprep.subr.mxu0 %v431
        %777 = vmatpush1.msra.mxu0 %v430
        %778 = vmatprep.subr.mxu0 %v434
        %779 = vmatpush1.msra.mxu0 %v433
        %780 = vmatprep.subr.mxu0 %v437
        %781 = vmatpush1.msra.mxu0 %v436
        %782 = vmatprep.subr.mxu0 %v440
        %783 = vmatpush1.msra.mxu0 %v439
        %784 = vmatprep.subr.mxu0 %v443
        %785 = vmatpush1.msra.mxu0 %v442
        %786 = vmatprep.subr.mxu0 %v446
        %787 = vmatpush1.msra.mxu0 %v445
        %788 = vmatprep.subr.mxu0 %v449
        %789 = vmatpush1.msra.mxu0 %v448
        %790 = vmatprep.subr.mxu0 0.0
        %791 = vmatpush1.msra.mxu0 0.0
        %792 = vmatprep.subr.mxu0 0.0
        %793 = vmatpush1.msra.mxu0 0.0
        %794 = vmatprep.subr.mxu0 0.0
        %795 = vmatpush1.msra.mxu0 0.0
        %796 = vmatprep.subr.mxu0 0.0
        %797 = vmatpush1.msra.mxu0 0.0
        %798 = vmatprep.subr.mxu0 0.0
        %799 = vmatpush1.msra.mxu0 0.0
        %800 = vmatprep.subr.mxu0 0.0
        %801 = vmatpush1.msra.mxu0 0.0
        %802 = vmatprep.subr.mxu0 0.0
        %803 = vmatpush1.msra.mxu0 0.0
        %804 = vmatprep.subr.mxu0 0.0
        %805 = vmatpush1.msra.mxu0 0.0
        %806 = vmatprep.subr.mxu0 0.0
        %807 = vmatpush1.msra.mxu0 0.0
        %808 = vmatprep.subr.mxu0 0.0
        %809 = vmatpush1.msra.mxu0 0.0
        %810 = vmatprep.subr.mxu0 0.0
        %811 = vmatpush1.msra.mxu0 0.0
        %812 = vmatprep.subr.mxu0 0.0
        %813 = vmatpush1.msra.mxu0 0.0
        %814 = vmatprep.subr.mxu0 0.0
        %815 = vmatpush1.msra.mxu0 0.0
        %816 = vmatprep.subr.mxu0 0.0
        %817 = vmatpush1.msra.mxu0 0.0
        %818 = vmatprep.subr.mxu0 0.0
        %819 = vmatpush1.msra.mxu0 0.0
        %820 = vmatprep.subr.mxu0 0.0
        %821 = vmatpush1.msra.mxu0 0.0
        %822 = vmatprep.mubr.f32.mxu0 0.0
        %823 = vmatmul.mubr.f32.gmra.mrb[0].mxu0 0.0
        %v824 = vpop.f32.mrb[0].mxu0
        %v825 = vadd.f32 %v457, %v824
        %v826 = vpop.f32.mrb[0].mxu0
        %v827 = vadd.f32 %v461, %v826
        %828 = vdwg.mxu0
        %829 = vmatprep.subr.mxu0 0.0
        %830 = vmatpush1.msra.mxu0 %v405
        %831 = vmatprep.subr.mxu0 0.0
        %832 = vmatpush1.msra.mxu0 %v408
        %833 = vmatprep.subr.mxu0 0.0
        %834 = vmatpush1.msra.mxu0 %v411
        %835 = vmatprep.subr.mxu0 0.0
        %836 = vmatpush1.msra.mxu0 %v414
        %837 = vmatprep.subr.mxu0 0.0
        %838 = vmatpush1.msra.mxu0 %v417
        %839 = vmatprep.subr.mxu0 0.0
        %840 = vmatpush1.msra.mxu0 %v420
        %841 = vmatprep.subr.mxu0 0.0
        %842 = vmatpush1.msra.mxu0 %v423
        %843 = vmatprep.subr.mxu0 0.0
        %844 = vmatpush1.msra.mxu0 %v426
        %845 = vmatprep.subr.mxu0 0.0
        %846 = vmatpush1.msra.mxu0 %v429
        %847 = vmatprep.subr.mxu0 0.0
        %848 = vmatpush1.msra.mxu0 %v432
        %849 = vmatprep.subr.mxu0 0.0
        %850 = vmatpush1.msra.mxu0 %v435
        %851 = vmatprep.subr.mxu0 0.0
        %852 = vmatpush1.msra.mxu0 %v438
        %853 = vmatprep.subr.mxu0 0.0
        %854 = vmatpush1.msra.mxu0 %v441
        %855 = vmatprep.subr.mxu0 0.0
        %856 = vmatpush1.msra.mxu0 %v444
        %857 = vmatprep.subr.mxu0 0.0
        %858 = vmatpush1.msra.mxu0 %v447
        %859 = vmatprep.subr.mxu0 0.0
        %860 = vmatpush1.msra.mxu0 %v450
        %861 = vmatprep.subr.mxu0 0.0
        %862 = vmatpush1.msra.mxu0 0.0
        %863 = vmatprep.subr.mxu0 0.0
        %864 = vmatpush1.msra.mxu0 0.0
        %865 = vmatprep.subr.mxu0 0.0
        %866 = vmatpush1.msra.mxu0 0.0
        %867 = vmatprep.subr.mxu0 0.0
        %868 = vmatpush1.msra.mxu0 0.0
        %869 = vmatprep.subr.mxu0 0.0
        %870 = vmatpush1.msra.mxu0 0.0
        %871 = vmatprep.subr.mxu0 0.0
        %872 = vmatpush1.msra.mxu0 0.0
        %873 = vmatprep.subr.mxu0 0.0
        %874 = vmatpush1.msra.mxu0 0.0
        %875 = vmatprep.subr.mxu0 0.0
        %876 = vmatpush1.msra.mxu0 0.0
        %877 = vmatprep.subr.mxu0 0.0
        %878 = vmatpush1.msra.mxu0 0.0
        %879 = vmatprep.subr.mxu0 0.0
        %880 = vmatpush1.msra.mxu0 0.0
        %881 = vmatprep.subr.mxu0 0.0
        %882 = vmatpush1.msra.mxu0 0.0
        %883 = vmatprep.subr.mxu0 0.0
        %884 = vmatpush1.msra.mxu0 0.0
        %885 = vmatprep.subr.mxu0 0.0
        %886 = vmatpush1.msra.mxu0 0.0
        %887 = vmatprep.subr.mxu0 0.0
        %888 = vmatpush1.msra.mxu0 0.0
        %889 = vmatprep.subr.mxu0 0.0
        %890 = vmatpush1.msra.mxu0 0.0
        %891 = vmatprep.subr.mxu0 0.0
        %892 = vmatpush1.msra.mxu0 0.0
        %893 = vmatprep.mubr.f32.mxu0 0.0
        %894 = vmatmul.mubr.f32.gmra.mrb[0].mxu0 0.0
        %v895 = vpop.f32.mrb[0].mxu0
        %v896 = vadd.f32 %v465, %v895
        %v897 = vpop.f32.mrb[0].mxu0
        %898 = vdwg.mxu0
        %v899 = vadd.f32 %v755, %v825
        %v900 = vxor.u32 %v899, 2147483648
        %v901 = vmul.f32 %v900, 1.442695
        %v902 = vpow.pop %v901
        %v903 = vadd.f32 %v902, 1.0
        %v904 = vrcp.pop %v903
        %v905 = vmul.f32 1.0, %v904
        %v906 = vadd.f32 %v756, %v827
        %v907 = vxor.u32 %v906, 2147483648
        %v908 = vmul.f32 %v907, 1.442695
        %v909 = vpow.pop %v908
        %v910 = vadd.f32 %v909, 1.0
        %v911 = vrcp.pop %v910
        %v912 = vmul.f32 1.0, %v911
        %v913 = vmul.f32 %v905, %v896
        %v914 = vadd.f32 %v757, %v913
        %v915 = vtanh.pop %v914
        %v916 = vsub.f32 1.0, %v912
        %v917 = vmul.f32 %v916, %v915
        %v918 = vmul.f32 %v912, 0.0
        %v919 = vadd.f32 %v917, %v918
        %920 = vst [vmem:[#allocation9] sm:$0xff] %v919
        %s921 = scalar_lea.vmem [#allocation2], 24
        %v922 = vld [vmem:[%s921] sm:$0xff]
        %v923 = vld [vmem:[%s921 + $0x8] sm:$0xff]
        %v924 = vld [vmem:[%s921 + $0x10] sm:$0xff]
        %925 = vmatprep.subr.mxu0 %v404
        %926 = vmatpush1.msra.mxu0 %v403
        %927 = vmatprep.subr.mxu0 %v407
        %928 = vmatpush1.msra.mxu0 %v406
        %929 = vmatprep.subr.mxu0 %v410
        %930 = vmatpush1.msra.mxu0 %v409
        %931 = vmatprep.subr.mxu0 %v413
        %932 = vmatpush1.msra.mxu0 %v412
        %933 = vmatprep.subr.mxu0 %v416
        %934 = vmatpush1.msra.mxu0 %v415
        %935 = vmatprep.subr.mxu0 %v419
        %936 = vmatpush1.msra.mxu0 %v418
        %937 = vmatprep.subr.mxu0 %v422
        %938 = vmatpush1.msra.mxu0 %v421
        %939 = vmatprep.subr.mxu0 %v425
        %940 = vmatpush1.msra.mxu0 %v424
        %941 = vmatprep.subr.mxu0 %v428
        %942 = vmatpush1.msra.mxu0 %v427
        %943 = vmatprep.subr.mxu0 %v431
        %944 = vmatpush1.msra.mxu0 %v430
        %945 = vmatprep.subr.mxu0 %v434
        %946 = vmatpush1.msra.mxu0 %v433
        %947 = vmatprep.subr.mxu0 %v437
        %948 = vmatpush1.msra.mxu0 %v436
        %949 = vmatprep.subr.mxu0 %v440
        %950 = vmatpush1.msra.mxu0 %v439
        %951 = vmatprep.subr.mxu0 %v443
        %952 = vmatpush1.msra.mxu0 %v442
        %953 = vmatprep.subr.mxu0 %v446
        %954 = vmatpush1.msra.mxu0 %v445
        %955 = vmatprep.subr.mxu0 %v449
        %956 = vmatpush1.msra.mxu0 %v448
        %957 = vmatprep.subr.mxu0 0.0
        %958 = vmatpush1.msra.mxu0 0.0
        %959 = vmatprep.subr.mxu0 0.0
        %960 = vmatpush1.msra.mxu0 0.0
        %961 = vmatprep.subr.mxu0 0.0
        %962 = vmatpush1.msra.mxu0 0.0
        %963 = vmatprep.subr.mxu0 0.0
        %964 = vmatpush1.msra.mxu0 0.0
        %965 = vmatprep.subr.mxu0 0.0
        %966 = vmatpush1.msra.mxu0 0.0
        %967 = vmatprep.subr.mxu0 0.0
        %968 = vmatpush1.msra.mxu0 0.0
        %969 = vmatprep.subr.mxu0 0.0
        %970 = vmatpush1.msra.mxu0 0.0
        %971 = vmatprep.subr.mxu0 0.0
        %972 = vmatpush1.msra.mxu0 0.0
        %973 = vmatprep.subr.mxu0 0.0
        %974 = vmatpush1.msra.mxu0 0.0
        %975 = vmatprep.subr.mxu0 0.0
        %976 = vmatpush1.msra.mxu0 0.0
        %977 = vmatprep.subr.mxu0 0.0
        %978 = vmatpush1.msra.mxu0 0.0
        %979 = vmatprep.subr.mxu0 0.0
        %980 = vmatpush1.msra.mxu0 0.0
        %981 = vmatprep.subr.mxu0 0.0
        %982 = vmatpush1.msra.mxu0 0.0
        %983 = vmatprep.subr.mxu0 0.0
        %984 = vmatpush1.msra.mxu0 0.0
        %985 = vmatprep.subr.mxu0 0.0
        %986 = vmatpush1.msra.mxu0 0.0
        %987 = vmatprep.subr.mxu0 0.0
        %988 = vmatpush1.msra.mxu0 0.0
        %989 = vmatprep.mubr.f32.mxu0 0.0
        %990 = vmatmul.mubr.f32.gmra.mrb[0].mxu0 %v919
        %v991 = vpop.f32.mrb[0].mxu0
        %v992 = vadd.f32 %v457, %v991
        %v993 = vpop.f32.mrb[0].mxu0
        %v994 = vadd.f32 %v461, %v993
        %995 = vdwg.mxu0
        %996 = vmatprep.subr.mxu0 0.0
        %997 = vmatpush1.msra.mxu0 %v405
        %998 = vmatprep.subr.mxu0 0.0
        %999 = vmatpush1.msra.mxu0 %v408
        %1000 = vmatprep.subr.mxu0 0.0
        %1001 = vmatpush1.msra.mxu0 %v411
        %1002 = vmatprep.subr.mxu0 0.0
        %1003 = vmatpush1.msra.mxu0 %v414
        %1004 = vmatprep.subr.mxu0 0.0
        %1005 = vmatpush1.msra.mxu0 %v417
        %1006 = vmatprep.subr.mxu0 0.0
        %1007 = vmatpush1.msra.mxu0 %v420
        %1008 = vmatprep.subr.mxu0 0.0
        %1009 = vmatpush1.msra.mxu0 %v423
        %1010 = vmatprep.subr.mxu0 0.0
        %1011 = vmatpush1.msra.mxu0 %v426
        %1012 = vmatprep.subr.mxu0 0.0
        %1013 = vmatpush1.msra.mxu0 %v429
        %1014 = vmatprep.subr.mxu0 0.0
        %1015 = vmatpush1.msra.mxu0 %v432
        %1016 = vmatprep.subr.mxu0 0.0
        %1017 = vmatpush1.msra.mxu0 %v435
        %1018 = vmatprep.subr.mxu0 0.0
        %1019 = vmatpush1.msra.mxu0 %v438
        %1020 = vmatprep.subr.mxu0 0.0
        %1021 = vmatpush1.msra.mxu0 %v441
        %1022 = vmatprep.subr.mxu0 0.0
        %1023 = vmatpush1.msra.mxu0 %v444
        %1024 = vmatprep.subr.mxu0 0.0
        %1025 = vmatpush1.msra.mxu0 %v447
        %1026 = vmatprep.subr.mxu0 0.0
        %1027 = vmatpush1.msra.mxu0 %v450
        %1028 = vmatprep.subr.mxu0 0.0
        %1029 = vmatpush1.msra.mxu0 0.0
        %1030 = vmatprep.subr.mxu0 0.0
        %1031 = vmatpush1.msra.mxu0 0.0
        %1032 = vmatprep.subr.mxu0 0.0
        %1033 = vmatpush1.msra.mxu0 0.0
        %1034 = vmatprep.subr.mxu0 0.0
        %1035 = vmatpush1.msra.mxu0 0.0
        %1036 = vmatprep.subr.mxu0 0.0
        %1037 = vmatpush1.msra.mxu0 0.0
        %1038 = vmatprep.subr.mxu0 0.0
        %1039 = vmatpush1.msra.mxu0 0.0
        %1040 = vmatprep.subr.mxu0 0.0
        %1041 = vmatpush1.msra.mxu0 0.0
        %1042 = vmatprep.subr.mxu0 0.0
        %1043 = vmatpush1.msra.mxu0 0.0
        %1044 = vmatprep.subr.mxu0 0.0
        %1045 = vmatpush1.msra.mxu0 0.0
        %1046 = vmatprep.subr.mxu0 0.0
        %1047 = vmatpush1.msra.mxu0 0.0
        %1048 = vmatprep.subr.mxu0 0.0
        %1049 = vmatpush1.msra.mxu0 0.0
        %1050 = vmatprep.subr.mxu0 0.0
        %1051 = vmatpush1.msra.mxu0 0.0
        %1052 = vmatprep.subr.mxu0 0.0
        %1053 = vmatpush1.msra.mxu0 0.0
        %1054 = vmatprep.subr.mxu0 0.0
        %1055 = vmatpush1.msra.mxu0 0.0
        %1056 = vmatprep.subr.mxu0 0.0
        %1057 = vmatpush1.msra.mxu0 0.0
        %1058 = vmatprep.subr.mxu0 0.0
        %1059 = vmatpush1.msra.mxu0 0.0
        %1060 = vmatprep.mubr.f32.mxu0 0.0
        %1061 = vmatmul.mubr.f32.gmra.mrb[0].mxu0 %v919
        %v1062 = vpop.f32.mrb[0].mxu0
        %v1063 = vadd.f32 %v465, %v1062
        %v1064 = vpop.f32.mrb[0].mxu0
        %1065 = vdwg.mxu0
        %v1066 = vadd.f32 %v922, %v992
        %v1067 = vxor.u32 %v1066, 2147483648
        %v1068 = vmul.f32 %v1067, 1.442695
        %v1069 = vpow.pop %v1068
        %v1070 = vadd.f32 %v1069, 1.0
        %v1071 = vrcp.pop %v1070
        %v1072 = vmul.f32 1.0, %v1071
        %v1073 = vadd.f32 %v923, %v994
        %v1074 = vxor.u32 %v1073, 2147483648
        %v1075 = vmul.f32 %v1074, 1.442695
        %v1076 = vpow.pop %v1075
        %v1077 = vadd.f32 %v1076, 1.0
        %v1078 = vrcp.pop %v1077
        %v1079 = vmul.f32 1.0, %v1078
        %v1080 = vmul.f32 %v1072, %v1063
        %v1081 = vadd.f32 %v924, %v1080
        %v1082 = vtanh.pop %v1081
        %v1083 = vsub.f32 1.0, %v1079
        %v1084 = vmul.f32 %v1083, %v1082
        %v1085 = vmul.f32 %v1079, %v919
        %v1086 = vadd.f32 %v1084, %v1085
        %s1087 = scalar_lea.vmem [#allocation9], 8
        %1088 = vst [vmem:[%s1087] sm:$0xff] %v1086
        %s1089 = scalar_lea.vmem [#allocation2], 48
        %v1090 = vld [vmem:[%s1089] sm:$0xff]
        %v1091 = vld [vmem:[%s1089 + $0x8] sm:$0xff]
        %v1092 = vld [vmem:[%s1089 + $0x10] sm:$0xff]
        %1093 = vmatprep.subr.mxu0 %v404
        %1094 = vmatpush1.msra.mxu0 %v403
        %1095 = vmatprep.subr.mxu0 %v407
        %1096 = vmatpush1.msra.mxu0 %v406
        %1097 = vmatprep.subr.mxu0 %v410
        %1098 = vmatpush1.msra.mxu0 %v409
        %1099 = vmatprep.subr.mxu0 %v413
        %1100 = vmatpush1.msra.mxu0 %v412
        %1101 = vmatprep.subr.mxu0 %v416
        %1102 = vmatpush1.msra.mxu0 %v415
        %1103 = vmatprep.subr.mxu0 %v419
        %1104 = vmatpush1.msra.mxu0 %v418
        %1105 = vmatprep.subr.mxu0 %v422
        %1106 = vmatpush1.msra.mxu0 %v421
        %1107 = vmatprep.subr.mxu0 %v425
        %1108 = vmatpush1.msra.mxu0 %v424
        %1109 = vmatprep.subr.mxu0 %v428
        %1110 = vmatpush1.msra.mxu0 %v427
        %1111 = vmatprep.subr.mxu0 %v431
        %1112 = vmatpush1.msra.mxu0 %v430
        %1113 = vmatprep.subr.mxu0 %v434
        %1114 = vmatpush1.msra.mxu0 %v433
        %1115 = vmatprep.subr.mxu0 %v437
        %1116 = vmatpush1.msra.mxu0 %v436
        %1117 = vmatprep.subr.mxu0 %v440
        %1118 = vmatpush1.msra.mxu0 %v439
        %1119 = vmatprep.subr.mxu0 %v443
        %1120 = vmatpush1.msra.mxu0 %v442
        %1121 = vmatprep.subr.mxu0 %v446
        %1122 = vmatpush1.msra.mxu0 %v445
        %1123 = vmatprep.subr.mxu0 %v449
        %1124 = vmatpush1.msra.mxu0 %v448
        %1125 = vmatprep.subr.mxu0 0.0
        %1126 = vmatpush1.msra.mxu0 0.0
        %1127 = vmatprep.subr.mxu0 0.0
        %1128 = vmatpush1.msra.mxu0 0.0
        %1129 = vmatprep.subr.mxu0 0.0
        %1130 = vmatpush1.msra.mxu0 0.0
        %1131 = vmatprep.subr.mxu0 0.0
        %1132 = vmatpush1.msra.mxu0 0.0
        %1133 = vmatprep.subr.mxu0 0.0
        %1134 = vmatpush1.msra.mxu0 0.0
        %1135 = vmatprep.subr.mxu0 0.0
        %1136 = vmatpush1.msra.mxu0 0.0
        %1137 = vmatprep.subr.mxu0 0.0
        %1138 = vmatpush1.msra.mxu0 0.0
        %1139 = vmatprep.subr.mxu0 0.0
        %1140 = vmatpush1.msra.mxu0 0.0
        %1141 = vmatprep.subr.mxu0 0.0
        %1142 = vmatpush1.msra.mxu0 0.0
        %1143 = vmatprep.subr.mxu0 0.0
        %1144 = vmatpush1.msra.mxu0 0.0
        %1145 = vmatprep.subr.mxu0 0.0
        %1146 = vmatpush1.msra.mxu0 0.0
        %1147 = vmatprep.subr.mxu0 0.0
        %1148 = vmatpush1.msra.mxu0 0.0
        %1149 = vmatprep.subr.mxu0 0.0
        %1150 = vmatpush1.msra.mxu0 0.0
        %1151 = vmatprep.subr.mxu0 0.0
        %1152 = vmatpush1.msra.mxu0 0.0
        %1153 = vmatprep.subr.mxu0 0.0
        %1154 = vmatpush1.msra.mxu0 0.0
        %1155 = vmatprep.subr.mxu0 0.0
        %1156 = vmatpush1.msra.mxu0 0.0
        %1157 = vmatprep.mubr.f32.mxu0 0.0
        %1158 = vmatmul.mubr.f32.gmra.mrb[0].mxu0 %v1086
        %v1159 = vpop.f32.mrb[0].mxu0
        %v1160 = vadd.f32 %v457, %v1159
        %v1161 = vpop.f32.mrb[0].mxu0
        %v1162 = vadd.f32 %v461, %v1161
        %1163 = vdwg.mxu0
        %1164 = vmatprep.subr.mxu0 0.0
        %1165 = vmatpush1.msra.mxu0 %v405
        %1166 = vmatprep.subr.mxu0 0.0
        %1167 = vmatpush1.msra.mxu0 %v408
        %1168 = vmatprep.subr.mxu0 0.0
        %1169 = vmatpush1.msra.mxu0 %v411
        %1170 = vmatprep.subr.mxu0 0.0
        %1171 = vmatpush1.msra.mxu0 %v414
        %1172 = vmatprep.subr.mxu0 0.0
        %1173 = vmatpush1.msra.mxu0 %v417
        %1174 = vmatprep.subr.mxu0 0.0
        %1175 = vmatpush1.msra.mxu0 %v420
        %1176 = vmatprep.subr.mxu0 0.0
        %1177 = vmatpush1.msra.mxu0 %v423
        %1178 = vmatprep.subr.mxu0 0.0
        %1179 = vmatpush1.msra.mxu0 %v426
        %1180 = vmatprep.subr.mxu0 0.0
        %1181 = vmatpush1.msra.mxu0 %v429
        %1182 = vmatprep.subr.mxu0 0.0
        %1183 = vmatpush1.msra.mxu0 %v432
        %1184 = vmatprep.subr.mxu0 0.0
        %1185 = vmatpush1.msra.mxu0 %v435
        %1186 = vmatprep.subr.mxu0 0.0
        %1187 = vmatpush1.msra.mxu0 %v438
        %1188 = vmatprep.subr.mxu0 0.0
        %1189 = vmatpush1.msra.mxu0 %v441
        %1190 = vmatprep.subr.mxu0 0.0
        %1191 = vmatpush1.msra.mxu0 %v444
        %1192 = vmatprep.subr.mxu0 0.0
        %1193 = vmatpush1.msra.mxu0 %v447
        %1194 = vmatprep.subr.mxu0 0.0
        %1195 = vmatpush1.msra.mxu0 %v450
        %1196 = vmatprep.subr.mxu0 0.0
        %1197 = vmatpush1.msra.mxu0 0.0
        %1198 = vmatprep.subr.mxu0 0.0
        %1199 = vmatpush1.msra.mxu0 0.0
        %1200 = vmatprep.subr.mxu0 0.0
        %1201 = vmatpush1.msra.mxu0 0.0
        %1202 = vmatprep.subr.mxu0 0.0
        %1203 = vmatpush1.msra.mxu0 0.0
        %1204 = vmatprep.subr.mxu0 0.0
        %1205 = vmatpush1.msra.mxu0 0.0
        %1206 = vmatprep.subr.mxu0 0.0
        %1207 = vmatpush1.msra.mxu0 0.0
        %1208 = vmatprep.subr.mxu0 0.0
        %1209 = vmatpush1.msra.mxu0 0.0
        %1210 = vmatprep.subr.mxu0 0.0
        %1211 = vmatpush1.msra.mxu0 0.0
        %1212 = vmatprep.subr.mxu0 0.0
        %1213 = vmatpush1.msra.mxu0 0.0
        %1214 = vmatprep.subr.mxu0 0.0
        %1215 = vmatpush1.msra.mxu0 0.0
        %1216 = vmatprep.subr.mxu0 0.0
        %1217 = vmatpush1.msra.mxu0 0.0
        %1218 = vmatprep.subr.mxu0 0.0
        %1219 = vmatpush1.msra.mxu0 0.0
        %1220 = vmatprep.subr.mxu0 0.0
        %1221 = vmatpush1.msra.mxu0 0.0
        %1222 = vmatprep.subr.mxu0 0.0
        %1223 = vmatpush1.msra.mxu0 0.0
        %1224 = vmatprep.subr.mxu0 0.0
        %1225 = vmatpush1.msra.mxu0 0.0
        %1226 = vmatprep.subr.mxu0 0.0
        %1227 = vmatpush1.msra.mxu0 0.0
        %1228 = vmatprep.mubr.f32.mxu0 0.0
        %1229 = vmatmul.mubr.f32.gmra.mrb[0].mxu0 %v1086
        %v1230 = vpop.f32.mrb[0].mxu0
        %v1231 = vadd.f32 %v465, %v1230
        %v1232 = vpop.f32.mrb[0].mxu0
        %1233 = vdwg.mxu0
        %v1234 = vadd.f32 %v1090, %v1160
        %v1235 = vxor.u32 %v1234, 2147483648
        %v1236 = vmul.f32 %v1235, 1.442695
        %v1237 = vpow.pop %v1236
        %v1238 = vadd.f32 %v1237, 1.0
        %v1239 = vrcp.pop %v1238
        %v1240 = vmul.f32 1.0, %v1239
        %v1241 = vadd.f32 %v1091, %v1162
        %v1242 = vxor.u32 %v1241, 2147483648
        %v1243 = vmul.f32 %v1242, 1.442695
        %v1244 = vpow.pop %v1243
        %v1245 = vadd.f32 %v1244, 1.0
        %v1246 = vrcp.pop %v1245
        %v1247 = vmul.f32 1.0, %v1246
        %v1248 = vmul.f32 %v1240, %v1231
        %v1249 = vadd.f32 %v1092, %v1248
        %v1250 = vtanh.pop %v1249
        %v1251 = vsub.f32 1.0, %v1247
        %v1252 = vmul.f32 %v1251, %v1250
        %v1253 = vmul.f32 %v1247, %v1086
        %v1254 = vadd.f32 %v1252, %v1253
        %s1255 = scalar_lea.vmem [#allocation9], 16
        %1256 = vst [vmem:[%s1255] sm:$0xff] %v1254
        %s1257 = scalar_lea.vmem [#allocation2], 72
        %v1258 = vld [vmem:[%s1257] sm:$0xff]
        %v1259 = vld [vmem:[%s1257 + $0x8] sm:$0xff]
        %v1260 = vld [vmem:[%s1257 + $0x10] sm:$0xff]
        %1261 = vmatprep.subr.mxu0 %v404
        %1262 = vmatpush1.msra.mxu0 %v403
        %1263 = vmatprep.subr.mxu0 %v407
        %1264 = vmatpush1.msra.mxu0 %v406
        %1265 = vmatprep.subr.mxu0 %v410
        %1266 = vmatpush1.msra.mxu0 %v409
        %1267 = vmatprep.subr.mxu0 %v413
        %1268 = vmatpush1.msra.mxu0 %v412
        %1269 = vmatprep.subr.mxu0 %v416
        %1270 = vmatpush1.msra.mxu0 %v415
        %1271 = vmatprep.subr.mxu0 %v419
        %1272 = vmatpush1.msra.mxu0 %v418
        %1273 = vmatprep.subr.mxu0 %v422
        %1274 = vmatpush1.msra.mxu0 %v421
        %1275 = vmatprep.subr.mxu0 %v425
        %1276 = vmatpush1.msra.mxu0 %v424
        %1277 = vmatprep.subr.mxu0 %v428
        %1278 = vmatpush1.msra.mxu0 %v427
        %1279 = vmatprep.subr.mxu0 %v431
        %1280 = vmatpush1.msra.mxu0 %v430
        %1281 = vmatprep.subr.mxu0 %v434
        %1282 = vmatpush1.msra.mxu0 %v433
        %1283 = vmatprep.subr.mxu0 %v437
        %1284 = vmatpush1.msra.mxu0 %v436
        %1285 = vmatprep.subr.mxu0 %v440
        %1286 = vmatpush1.msra.mxu0 %v439
        %1287 = vmatprep.subr.mxu0 %v443
        %1288 = vmatpush1.msra.mxu0 %v442
        %1289 = vmatprep.subr.mxu0 %v446
        %1290 = vmatpush1.msra.mxu0 %v445
        %1291 = vmatprep.subr.mxu0 %v449
        %1292 = vmatpush1.msra.mxu0 %v448
        %1293 = vmatprep.subr.mxu0 0.0
        %1294 = vmatpush1.msra.mxu0 0.0
        %1295 = vmatprep.subr.mxu0 0.0
        %1296 = vmatpush1.msra.mxu0 0.0
        %1297 = vmatprep.subr.mxu0 0.0
        %1298 = vmatpush1.msra.mxu0 0.0
        %1299 = vmatprep.subr.mxu0 0.0
        %1300 = vmatpush1.msra.mxu0 0.0
        %1301 = vmatprep.subr.mxu0 0.0
        %1302 = vmatpush1.msra.mxu0 0.0
        %1303 = vmatprep.subr.mxu0 0.0
        %1304 = vmatpush1.msra.mxu0 0.0
        %1305 = vmatprep.subr.mxu0 0.0
        %1306 = vmatpush1.msra.mxu0 0.0
        %1307 = vmatprep.subr.mxu0 0.0
        %1308 = vmatpush1.msra.mxu0 0.0
        %1309 = vmatprep.subr.mxu0 0.0
        %1310 = vmatpush1.msra.mxu0 0.0
        %1311 = vmatprep.subr.mxu0 0.0
        %1312 = vmatpush1.msra.mxu0 0.0
        %1313 = vmatprep.subr.mxu0 0.0
        %1314 = vmatpush1.msra.mxu0 0.0
        %1315 = vmatprep.subr.mxu0 0.0
        %1316 = vmatpush1.msra.mxu0 0.0
        %1317 = vmatprep.subr.mxu0 0.0
        %1318 = vmatpush1.msra.mxu0 0.0
        %1319 = vmatprep.subr.mxu0 0.0
        %1320 = vmatpush1.msra.mxu0 0.0
        %1321 = vmatprep.subr.mxu0 0.0
        %1322 = vmatpush1.msra.mxu0 0.0
        %1323 = vmatprep.subr.mxu0 0.0
        %1324 = vmatpush1.msra.mxu0 0.0
        %1325 = vmatprep.mubr.f32.mxu0 0.0
        %1326 = vmatmul.mubr.f32.gmra.mrb[0].mxu0 %v1254
        %v1327 = vpop.f32.mrb[0].mxu0
        %v1328 = vadd.f32 %v457, %v1327
        %v1329 = vpop.f32.mrb[0].mxu0
        %v1330 = vadd.f32 %v461, %v1329
        %1331 = vdwg.mxu0
        %1332 = vmatprep.subr.mxu0 0.0
        %1333 = vmatpush1.msra.mxu0 %v405
        %1334 = vmatprep.subr.mxu0 0.0
        %1335 = vmatpush1.msra.mxu0 %v408
        %1336 = vmatprep.subr.mxu0 0.0
        %1337 = vmatpush1.msra.mxu0 %v411
        %1338 = vmatprep.subr.mxu0 0.0
        %1339 = vmatpush1.msra.mxu0 %v414
        %1340 = vmatprep.subr.mxu0 0.0
        %1341 = vmatpush1.msra.mxu0 %v417
        %1342 = vmatprep.subr.mxu0 0.0
        %1343 = vmatpush1.msra.mxu0 %v420
        %1344 = vmatprep.subr.mxu0 0.0
        %1345 = vmatpush1.msra.mxu0 %v423
        %1346 = vmatprep.subr.mxu0 0.0
        %1347 = vmatpush1.msra.mxu0 %v426
        %1348 = vmatprep.subr.mxu0 0.0
        %1349 = vmatpush1.msra.mxu0 %v429
        %1350 = vmatprep.subr.mxu0 0.0
        %1351 = vmatpush1.msra.mxu0 %v432
        %1352 = vmatprep.subr.mxu0 0.0
        %1353 = vmatpush1.msra.mxu0 %v435
        %1354 = vmatprep.subr.mxu0 0.0
        %1355 = vmatpush1.msra.mxu0 %v438
        %1356 = vmatprep.subr.mxu0 0.0
        %1357 = vmatpush1.msra.mxu0 %v441
        %1358 = vmatprep.subr.mxu0 0.0
        %1359 = vmatpush1.msra.mxu0 %v444
        %1360 = vmatprep.subr.mxu0 0.0
        %1361 = vmatpush1.msra.mxu0 %v447
        %1362 = vmatprep.subr.mxu0 0.0
        %1363 = vmatpush1.msra.mxu0 %v450
        %1364 = vmatprep.subr.mxu0 0.0
        %1365 = vmatpush1.msra.mxu0 0.0
        %1366 = vmatprep.subr.mxu0 0.0
        %1367 = vmatpush1.msra.mxu0 0.0
        %1368 = vmatprep.subr.mxu0 0.0
        %1369 = vmatpush1.msra.mxu0 0.0
        %1370 = vmatprep.subr.mxu0 0.0
        %1371 = vmatpush1.msra.mxu0 0.0
        %1372 = vmatprep.subr.mxu0 0.0
        %1373 = vmatpush1.msra.mxu0 0.0
        %1374 = vmatprep.subr.mxu0 0.0
        %1375 = vmatpush1.msra.mxu0 0.0
        %1376 = vmatprep.subr.mxu0 0.0
        %1377 = vmatpush1.msra.mxu0 0.0
        %1378 = vmatprep.subr.mxu0 0.0
        %1379 = vmatpush1.msra.mxu0 0.0
        %1380 = vmatprep.subr.mxu0 0.0
        %1381 = vmatpush1.msra.mxu0 0.0
        %1382 = vmatprep.subr.mxu0 0.0
        %1383 = vmatpush1.msra.mxu0 0.0
        %1384 = vmatprep.subr.mxu0 0.0
        %1385 = vmatpush1.msra.mxu0 0.0
        %1386 = vmatprep.subr.mxu0 0.0
        %1387 = vmatpush1.msra.mxu0 0.0
        %1388 = vmatprep.subr.mxu0 0.0
        %1389 = vmatpush1.msra.mxu0 0.0
        %1390 = vmatprep.subr.mxu0 0.0
        %1391 = vmatpush1.msra.mxu0 0.0
        %1392 = vmatprep.subr.mxu0 0.0
        %1393 = vmatpush1.msra.mxu0 0.0
        %1394 = vmatprep.subr.mxu0 0.0
        %1395 = vmatpush1.msra.mxu0 0.0
        %1396 = vmatprep.mubr.f32.mxu0 0.0
        %1397 = vmatmul.mubr.f32.gmra.mrb[0].mxu0 %v1254
        %v1398 = vpop.f32.mrb[0].mxu0
        %v1399 = vadd.f32 %v465, %v1398
        %v1400 = vpop.f32.mrb[0].mxu0
        %1401 = vdwg.mxu0
        %v1402 = vadd.f32 %v1258, %v1328
        %v1403 = vxor.u32 %v1402, 2147483648
        %v1404 = vmul.f32 %v1403, 1.442695
        %v1405 = vpow.pop %v1404
        %v1406 = vadd.f32 %v1405, 1.0
        %v1407 = vrcp.pop %v1406
        %v1408 = vmul.f32 1.0, %v1407
        %v1409 = vadd.f32 %v1259, %v1330
        %v1410 = vxor.u32 %v1409, 2147483648
        %v1411 = vmul.f32 %v1410, 1.442695
        %v1412 = vpow.pop %v1411
        %v1413 = vadd.f32 %v1412, 1.0
        %v1414 = vrcp.pop %v1413
        %v1415 = vmul.f32 1.0, %v1414
        %v1416 = vmul.f32 %v1408, %v1399
        %v1417 = vadd.f32 %v1260, %v1416
        %v1418 = vtanh.pop %v1417
        %v1419 = vsub.f32 1.0, %v1415
        %v1420 = vmul.f32 %v1419, %v1418
        %v1421 = vmul.f32 %v1415, %v1254
        %v1422 = vadd.f32 %v1420, %v1421
        %s1423 = scalar_lea.vmem [#allocation9], 24
        %1424 = vst [vmem:[%s1423] sm:$0xff] %v1422
        %s1425 = scalar_lea.vmem [#allocation2], 96
        %v1426 = vld [vmem:[%s1425] sm:$0xff]
        %v1427 = vld [vmem:[%s1425 + $0x8] sm:$0xff]
        %v1428 = vld [vmem:[%s1425 + $0x10] sm:$0xff]
        %1429 = vmatprep.subr.mxu0 %v404
        %1430 = vmatpush1.msra.mxu0 %v403
        %1431 = vmatprep.subr.mxu0 %v407
        %1432 = vmatpush1.msra.mxu0 %v406
        %1433 = vmatprep.subr.mxu0 %v410
        %1434 = vmatpush1.msra.mxu0 %v409
        %1435 = vmatprep.subr.mxu0 %v413
        %1436 = vmatpush1.msra.mxu0 %v412
        %1437 = vmatprep.subr.mxu0 %v416
        %1438 = vmatpush1.msra.mxu0 %v415
        %1439 = vmatprep.subr.mxu0 %v419
        %1440 = vmatpush1.msra.mxu0 %v418
        %1441 = vmatprep.subr.mxu0 %v422
        %1442 = vmatpush1.msra.mxu0 %v421
        %1443 = vmatprep.subr.mxu0 %v425
        %1444 = vmatpush1.msra.mxu0 %v424
        %1445 = vmatprep.subr.mxu0 %v428
        %1446 = vmatpush1.msra.mxu0 %v427
        %1447 = vmatprep.subr.mxu0 %v431
        %1448 = vmatpush1.msra.mxu0 %v430
        %1449 = vmatprep.subr.mxu0 %v434
        %1450 = vmatpush1.msra.mxu0 %v433
        %1451 = vmatprep.subr.mxu0 %v437
        %1452 = vmatpush1.msra.mxu0 %v436
        %1453 = vmatprep.subr.mxu0 %v440
        %1454 = vmatpush1.msra.mxu0 %v439
        %1455 = vmatprep.subr.mxu0 %v443
        %1456 = vmatpush1.msra.mxu0 %v442
        %1457 = vmatprep.subr.mxu0 %v446
        %1458 = vmatpush1.msra.mxu0 %v445
        %1459 = vmatprep.subr.mxu0 %v449
        %1460 = vmatpush1.msra.mxu0 %v448
        %1461 = vmatprep.subr.mxu0 0.0
        %1462 = vmatpush1.msra.mxu0 0.0
        %1463 = vmatprep.subr.mxu0 0.0
        %1464 = vmatpush1.msra.mxu0 0.0
        %1465 = vmatprep.subr.mxu0 0.0
        %1466 = vmatpush1.msra.mxu0 0.0
        %1467 = vmatprep.subr.mxu0 0.0
        %1468 = vmatpush1.msra.mxu0 0.0
        %1469 = vmatprep.subr.mxu0 0.0
        %1470 = vmatpush1.msra.mxu0 0.0
        %1471 = vmatprep.subr.mxu0 0.0
        %1472 = vmatpush1.msra.mxu0 0.0
        %1473 = vmatprep.subr.mxu0 0.0
        %1474 = vmatpush1.msra.mxu0 0.0
        %1475 = vmatprep.subr.mxu0 0.0
        %1476 = vmatpush1.msra.mxu0 0.0
        %1477 = vmatprep.subr.mxu0 0.0
        %1478 = vmatpush1.msra.mxu0 0.0
        %1479 = vmatprep.subr.mxu0 0.0
        %1480 = vmatpush1.msra.mxu0 0.0
        %1481 = vmatprep.subr.mxu0 0.0
        %1482 = vmatpush1.msra.mxu0 0.0
        %1483 = vmatprep.subr.mxu0 0.0
        %1484 = vmatpush1.msra.mxu0 0.0
        %1485 = vmatprep.subr.mxu0 0.0
        %1486 = vmatpush1.msra.mxu0 0.0
        %1487 = vmatprep.subr.mxu0 0.0
        %1488 = vmatpush1.msra.mxu0 0.0
        %1489 = vmatprep.subr.mxu0 0.0
        %1490 = vmatpush1.msra.mxu0 0.0
        %1491 = vmatprep.subr.mxu0 0.0
        %1492 = vmatpush1.msra.mxu0 0.0
        %1493 = vmatprep.mubr.f32.mxu0 0.0
        %1494 = vmatmul.mubr.f32.gmra.mrb[0].mxu0 %v1422
        %v1495 = vpop.f32.mrb[0].mxu0
        %v1496 = vadd.f32 %v457, %v1495
        %v1497 = vpop.f32.mrb[0].mxu0
        %v1498 = vadd.f32 %v461, %v1497
        %1499 = vdwg.mxu0
        %1500 = vmatprep.subr.mxu0 0.0
        %1501 = vmatpush1.msra.mxu0 %v405
        %1502 = vmatprep.subr.mxu0 0.0
        %1503 = vmatpush1.msra.mxu0 %v408
        %1504 = vmatprep.subr.mxu0 0.0
        %1505 = vmatpush1.msra.mxu0 %v411
        %1506 = vmatprep.subr.mxu0 0.0
        %1507 = vmatpush1.msra.mxu0 %v414
        %1508 = vmatprep.subr.mxu0 0.0
        %1509 = vmatpush1.msra.mxu0 %v417
        %1510 = vmatprep.subr.mxu0 0.0
        %1511 = vmatpush1.msra.mxu0 %v420
        %1512 = vmatprep.subr.mxu0 0.0
        %1513 = vmatpush1.msra.mxu0 %v423
        %1514 = vmatprep.subr.mxu0 0.0
        %1515 = vmatpush1.msra.mxu0 %v426
        %1516 = vmatprep.subr.mxu0 0.0
        %1517 = vmatpush1.msra.mxu0 %v429
        %1518 = vmatprep.subr.mxu0 0.0
        %1519 = vmatpush1.msra.mxu0 %v432
        %1520 = vmatprep.subr.mxu0 0.0
        %1521 = vmatpush1.msra.mxu0 %v435
        %1522 = vmatprep.subr.mxu0 0.0
        %1523 = vmatpush1.msra.mxu0 %v438
        %1524 = vmatprep.subr.mxu0 0.0
        %1525 = vmatpush1.msra.mxu0 %v441
        %1526 = vmatprep.subr.mxu0 0.0
        %1527 = vmatpush1.msra.mxu0 %v444
        %1528 = vmatprep.subr.mxu0 0.0
        %1529 = vmatpush1.msra.mxu0 %v447
        %1530 = vmatprep.subr.mxu0 0.0
        %1531 = vmatpush1.msra.mxu0 %v450
        %1532 = vmatprep.subr.mxu0 0.0
        %1533 = vmatpush1.msra.mxu0 0.0
        %1534 = vmatprep.subr.mxu0 0.0
        %1535 = vmatpush1.msra.mxu0 0.0
        %1536 = vmatprep.subr.mxu0 0.0
        %1537 = vmatpush1.msra.mxu0 0.0
        %1538 = vmatprep.subr.mxu0 0.0
        %1539 = vmatpush1.msra.mxu0 0.0
        %1540 = vmatprep.subr.mxu0 0.0
        %1541 = vmatpush1.msra.mxu0 0.0
        %1542 = vmatprep.subr.mxu0 0.0
        %1543 = vmatpush1.msra.mxu0 0.0
        %1544 = vmatprep.subr.mxu0 0.0
        %1545 = vmatpush1.msra.mxu0 0.0
        %1546 = vmatprep.subr.mxu0 0.0
        %1547 = vmatpush1.msra.mxu0 0.0
        %1548 = vmatprep.subr.mxu0 0.0
        %1549 = vmatpush1.msra.mxu0 0.0
        %1550 = vmatprep.subr.mxu0 0.0
        %1551 = vmatpush1.msra.mxu0 0.0
        %1552 = vmatprep.subr.mxu0 0.0
        %1553 = vmatpush1.msra.mxu0 0.0
        %1554 = vmatprep.subr.mxu0 0.0
        %1555 = vmatpush1.msra.mxu0 0.0
        %1556 = vmatprep.subr.mxu0 0.0
        %1557 = vmatpush1.msra.mxu0 0.0
        %1558 = vmatprep.subr.mxu0 0.0
        %1559 = vmatpush1.msra.mxu0 0.0
        %1560 = vmatprep.subr.mxu0 0.0
        %1561 = vmatpush1.msra.mxu0 0.0
        %1562 = vmatprep.subr.mxu0 0.0
        %1563 = vmatpush1.msra.mxu0 0.0
        %1564 = vmatprep.mubr.f32.mxu0 0.0
        %1565 = vmatmul.mubr.f32.gmra.mrb[0].mxu0 %v1422
        %v1566 = vpop.f32.mrb[0].mxu0
        %v1567 = vadd.f32 %v465, %v1566
        %v1568 = vpop.f32.mrb[0].mxu0
        %1569 = vdwg.mxu0
        %v1570 = vadd.f32 %v1426, %v1496
        %v1571 = vxor.u32 %v1570, 2147483648
        %v1572 = vmul.f32 %v1571, 1.442695
        %v1573 = vpow.pop %v1572
        %v1574 = vadd.f32 %v1573, 1.0
        %v1575 = vrcp.pop %v1574
        %v1576 = vmul.f32 1.0, %v1575
        %v1577 = vadd.f32 %v1427, %v1498
        %v1578 = vxor.u32 %v1577, 2147483648
        %v1579 = vmul.f32 %v1578, 1.442695
        %v1580 = vpow.pop %v1579
        %v1581 = vadd.f32 %v1580, 1.0
        %v1582 = vrcp.pop %v1581
        %v1583 = vmul.f32 1.0, %v1582
        %v1584 = vmul.f32 %v1576, %v1567
        %v1585 = vadd.f32 %v1428, %v1584
        %v1586 = vtanh.pop %v1585
        %v1587 = vsub.f32 1.0, %v1583
        %v1588 = vmul.f32 %v1587, %v1586
        %v1589 = vmul.f32 %v1583, %v1422
        %v1590 = vadd.f32 %v1588, %v1589
        %s1591 = scalar_lea.vmem [#allocation9], 32
        %1592 = vst [vmem:[%s1591] sm:$0xff] %v1590
        %s1593 = scalar_lea.vmem [#allocation2], 120
        %v1594 = vld [vmem:[%s1593] sm:$0xff]
        %v1595 = vld [vmem:[%s1593 + $0x8] sm:$0xff]
        %v1596 = vld [vmem:[%s1593 + $0x10] sm:$0xff]
        %1597 = vmatprep.subr.mxu0 %v404
        %1598 = vmatpush1.msra.mxu0 %v403
        %1599 = vmatprep.subr.mxu0 %v407
        %1600 = vmatpush1.msra.mxu0 %v406
        %1601 = vmatprep.subr.mxu0 %v410
        %1602 = vmatpush1.msra.mxu0 %v409
        %1603 = vmatprep.subr.mxu0 %v413
        %1604 = vmatpush1.msra.mxu0 %v412
        %1605 = vmatprep.subr.mxu0 %v416
        %1606 = vmatpush1.msra.mxu0 %v415
        %1607 = vmatprep.subr.mxu0 %v419
        %1608 = vmatpush1.msra.mxu0 %v418
        %1609 = vmatprep.subr.mxu0 %v422
        %1610 = vmatpush1.msra.mxu0 %v421
        %1611 = vmatprep.subr.mxu0 %v425
        %1612 = vmatpush1.msra.mxu0 %v424
        %1613 = vmatprep.subr.mxu0 %v428
        %1614 = vmatpush1.msra.mxu0 %v427
        %1615 = vmatprep.subr.mxu0 %v431
        %1616 = vmatpush1.msra.mxu0 %v430
        %1617 = vmatprep.subr.mxu0 %v434
        %1618 = vmatpush1.msra.mxu0 %v433
        %1619 = vmatprep.subr.mxu0 %v437
        %1620 = vmatpush1.msra.mxu0 %v436
        %1621 = vmatprep.subr.mxu0 %v440
        %1622 = vmatpush1.msra.mxu0 %v439
        %1623 = vmatprep.subr.mxu0 %v443
        %1624 = vmatpush1.msra.mxu0 %v442
        %1625 = vmatprep.subr.mxu0 %v446
        %1626 = vmatpush1.msra.mxu0 %v445
        %1627 = vmatprep.subr.mxu0 %v449
        %1628 = vmatpush1.msra.mxu0 %v448
        %1629 = vmatprep.subr.mxu0 0.0
        %1630 = vmatpush1.msra.mxu0 0.0
        %1631 = vmatprep.subr.mxu0 0.0
        %1632 = vmatpush1.msra.mxu0 0.0
        %1633 = vmatprep.subr.mxu0 0.0
        %1634 = vmatpush1.msra.mxu0 0.0
        %1635 = vmatprep.subr.mxu0 0.0
        %1636 = vmatpush1.msra.mxu0 0.0
        %1637 = vmatprep.subr.mxu0 0.0
        %1638 = vmatpush1.msra.mxu0 0.0
        %1639 = vmatprep.subr.mxu0 0.0
        %1640 = vmatpush1.msra.mxu0 0.0
        %1641 = vmatprep.subr.mxu0 0.0
        %1642 = vmatpush1.msra.mxu0 0.0
        %1643 = vmatprep.subr.mxu0 0.0
        %1644 = vmatpush1.msra.mxu0 0.0
        %1645 = vmatprep.subr.mxu0 0.0
        %1646 = vmatpush1.msra.mxu0 0.0
        %1647 = vmatprep.subr.mxu0 0.0
        %1648 = vmatpush1.msra.mxu0 0.0
        %1649 = vmatprep.subr.mxu0 0.0
        %1650 = vmatpush1.msra.mxu0 0.0
        %1651 = vmatprep.subr.mxu0 0.0
        %1652 = vmatpush1.msra.mxu0 0.0
        %1653 = vmatprep.subr.mxu0 0.0
        %1654 = vmatpush1.msra.mxu0 0.0
        %1655 = vmatprep.subr.mxu0 0.0
        %1656 = vmatpush1.msra.mxu0 0.0
        %1657 = vmatprep.subr.mxu0 0.0
        %1658 = vmatpush1.msra.mxu0 0.0
        %1659 = vmatprep.subr.mxu0 0.0
        %1660 = vmatpush1.msra.mxu0 0.0
        %1661 = vmatprep.mubr.f32.mxu0 0.0
        %1662 = vmatmul.mubr.f32.gmra.mrb[0].mxu0 %v1590
        %v1663 = vpop.f32.mrb[0].mxu0
        %v1664 = vadd.f32 %v457, %v1663
        %v1665 = vpop.f32.mrb[0].mxu0
        %v1666 = vadd.f32 %v461, %v1665
        %1667 = vdwg.mxu0
        %1668 = vmatprep.subr.mxu0 0.0
        %1669 = vmatpush1.msra.mxu0 %v405
        %1670 = vmatprep.subr.mxu0 0.0
        %1671 = vmatpush1.msra.mxu0 %v408
        %1672 = vmatprep.subr.mxu0 0.0
        %1673 = vmatpush1.msra.mxu0 %v411
        %1674 = vmatprep.subr.mxu0 0.0
        %1675 = vmatpush1.msra.mxu0 %v414
        %1676 = vmatprep.subr.mxu0 0.0
        %1677 = vmatpush1.msra.mxu0 %v417
        %1678 = vmatprep.subr.mxu0 0.0
        %1679 = vmatpush1.msra.mxu0 %v420
        %1680 = vmatprep.subr.mxu0 0.0
        %1681 = vmatpush1.msra.mxu0 %v423
        %1682 = vmatprep.subr.mxu0 0.0
        %1683 = vmatpush1.msra.mxu0 %v426
        %1684 = vmatprep.subr.mxu0 0.0
        %1685 = vmatpush1.msra.mxu0 %v429
        %1686 = vmatprep.subr.mxu0 0.0
        %1687 = vmatpush1.msra.mxu0 %v432
        %1688 = vmatprep.subr.mxu0 0.0
        %1689 = vmatpush1.msra.mxu0 %v435
        %1690 = vmatprep.subr.mxu0 0.0
        %1691 = vmatpush1.msra.mxu0 %v438
        %1692 = vmatprep.subr.mxu0 0.0
        %1693 = vmatpush1.msra.mxu0 %v441
        %1694 = vmatprep.subr.mxu0 0.0
        %1695 = vmatpush1.msra.mxu0 %v444
        %1696 = vmatprep.subr.mxu0 0.0
        %1697 = vmatpush1.msra.mxu0 %v447
        %1698 = vmatprep.subr.mxu0 0.0
        %1699 = vmatpush1.msra.mxu0 %v450
        %1700 = vmatprep.subr.mxu0 0.0
        %1701 = vmatpush1.msra.mxu0 0.0
        %1702 = vmatprep.subr.mxu0 0.0
        %1703 = vmatpush1.msra.mxu0 0.0
        %1704 = vmatprep.subr.mxu0 0.0
        %1705 = vmatpush1.msra.mxu0 0.0
        %1706 = vmatprep.subr.mxu0 0.0
        %1707 = vmatpush1.msra.mxu0 0.0
        %1708 = vmatprep.subr.mxu0 0.0
        %1709 = vmatpush1.msra.mxu0 0.0
        %1710 = vmatprep.subr.mxu0 0.0
        %1711 = vmatpush1.msra.mxu0 0.0
        %1712 = vmatprep.subr.mxu0 0.0
        %1713 = vmatpush1.msra.mxu0 0.0
        %1714 = vmatprep.subr.mxu0 0.0
        %1715 = vmatpush1.msra.mxu0 0.0
        %1716 = vmatprep.subr.mxu0 0.0
        %1717 = vmatpush1.msra.mxu0 0.0
        %1718 = vmatprep.subr.mxu0 0.0
        %1719 = vmatpush1.msra.mxu0 0.0
        %1720 = vmatprep.subr.mxu0 0.0
        %1721 = vmatpush1.msra.mxu0 0.0
        %1722 = vmatprep.subr.mxu0 0.0
        %1723 = vmatpush1.msra.mxu0 0.0
        %1724 = vmatprep.subr.mxu0 0.0
        %1725 = vmatpush1.msra.mxu0 0.0
        %1726 = vmatprep.subr.mxu0 0.0
        %1727 = vmatpush1.msra.mxu0 0.0
        %1728 = vmatprep.subr.mxu0 0.0
        %1729 = vmatpush1.msra.mxu0 0.0
        %1730 = vmatprep.subr.mxu0 0.0
        %1731 = vmatpush1.msra.mxu0 0.0
        %1732 = vmatprep.mubr.f32.mxu0 0.0
        %1733 = vmatmul.mubr.f32.gmra.mrb[0].mxu0 %v1590
        %v1734 = vpop.f32.mrb[0].mxu0
        %v1735 = vadd.f32 %v465, %v1734
        %v1736 = vpop.f32.mrb[0].mxu0
        %1737 = vdwg.mxu0
        %v1738 = vadd.f32 %v1594, %v1664
        %v1739 = vxor.u32 %v1738, 2147483648
        %v1740 = vmul.f32 %v1739, 1.442695
        %v1741 = vpow.pop %v1740
        %v1742 = vadd.f32 %v1741, 1.0
        %v1743 = vrcp.pop %v1742
        %v1744 = vmul.f32 1.0, %v1743
        %v1745 = vadd.f32 %v1595, %v1666
        %v1746 = vxor.u32 %v1745, 2147483648
        %v1747 = vmul.f32 %v1746, 1.442695
        %v1748 = vpow.pop %v1747
        %v1749 = vadd.f32 %v1748, 1.0
        %v1750 = vrcp.pop %v1749
        %v1751 = vmul.f32 1.0, %v1750
        %v1752 = vmul.f32 %v1744, %v1735
        %v1753 = vadd.f32 %v1596, %v1752
        %v1754 = vtanh.pop %v1753
        %v1755 = vsub.f32 1.0, %v1751
        %v1756 = vmul.f32 %v1755, %v1754
        %v1757 = vmul.f32 %v1751, %v1590
        %v1758 = vadd.f32 %v1756, %v1757
        %s1759 = scalar_lea.vmem [#allocation9], 40
        %1760 = vst [vmem:[%s1759] sm:$0xff] %v1758
        %s1761 = scalar_lea.vmem [#allocation2], 144
        %v1762 = vld [vmem:[%s1761] sm:$0xff]
        %v1763 = vld [vmem:[%s1761 + $0x8] sm:$0xff]
        %v1764 = vld [vmem:[%s1761 + $0x10] sm:$0xff]
        %1765 = vmatprep.subr.mxu0 %v404
        %1766 = vmatpush1.msra.mxu0 %v403
        %1767 = vmatprep.subr.mxu0 %v407
        %1768 = vmatpush1.msra.mxu0 %v406
        %1769 = vmatprep.subr.mxu0 %v410
        %1770 = vmatpush1.msra.mxu0 %v409
        %1771 = vmatprep.subr.mxu0 %v413
        %1772 = vmatpush1.msra.mxu0 %v412
        %1773 = vmatprep.subr.mxu0 %v416
        %1774 = vmatpush1.msra.mxu0 %v415
        %1775 = vmatprep.subr.mxu0 %v419
        %1776 = vmatpush1.msra.mxu0 %v418
        %1777 = vmatprep.subr.mxu0 %v422
        %1778 = vmatpush1.msra.mxu0 %v421
        %1779 = vmatprep.subr.mxu0 %v425
        %1780 = vmatpush1.msra.mxu0 %v424
        %1781 = vmatprep.subr.mxu0 %v428
        %1782 = vmatpush1.msra.mxu0 %v427
        %1783 = vmatprep.subr.mxu0 %v431
        %1784 = vmatpush1.msra.mxu0 %v430
        %1785 = vmatprep.subr.mxu0 %v434
        %1786 = vmatpush1.msra.mxu0 %v433
        %1787 = vmatprep.subr.mxu0 %v437
        %1788 = vmatpush1.msra.mxu0 %v436
        %1789 = vmatprep.subr.mxu0 %v440
        %1790 = vmatpush1.msra.mxu0 %v439
        %1791 = vmatprep.subr.mxu0 %v443
        %1792 = vmatpush1.msra.mxu0 %v442
        %1793 = vmatprep.subr.mxu0 %v446
        %1794 = vmatpush1.msra.mxu0 %v445
        %1795 = vmatprep.subr.mxu0 %v449
        %1796 = vmatpush1.msra.mxu0 %v448
        %1797 = vmatprep.subr.mxu0 0.0
        %1798 = vmatpush1.msra.mxu0 0.0
        %1799 = vmatprep.subr.mxu0 0.0
        %1800 = vmatpush1.msra.mxu0 0.0
        %1801 = vmatprep.subr.mxu0 0.0
        %1802 = vmatpush1.msra.mxu0 0.0
        %1803 = vmatprep.subr.mxu0 0.0
        %1804 = vmatpush1.msra.mxu0 0.0
        %1805 = vmatprep.subr.mxu0 0.0
        %1806 = vmatpush1.msra.mxu0 0.0
        %1807 = vmatprep.subr.mxu0 0.0
        %1808 = vmatpush1.msra.mxu0 0.0
        %1809 = vmatprep.subr.mxu0 0.0
        %1810 = vmatpush1.msra.mxu0 0.0
        %1811 = vmatprep.subr.mxu0 0.0
        %1812 = vmatpush1.msra.mxu0 0.0
        %1813 = vmatprep.subr.mxu0 0.0
        %1814 = vmatpush1.msra.mxu0 0.0
        %1815 = vmatprep.subr.mxu0 0.0
        %1816 = vmatpush1.msra.mxu0 0.0
        %1817 = vmatprep.subr.mxu0 0.0
        %1818 = vmatpush1.msra.mxu0 0.0
        %1819 = vmatprep.subr.mxu0 0.0
        %1820 = vmatpush1.msra.mxu0 0.0
        %1821 = vmatprep.subr.mxu0 0.0
        %1822 = vmatpush1.msra.mxu0 0.0
        %1823 = vmatprep.subr.mxu0 0.0
        %1824 = vmatpush1.msra.mxu0 0.0
        %1825 = vmatprep.subr.mxu0 0.0
        %1826 = vmatpush1.msra.mxu0 0.0
        %1827 = vmatprep.subr.mxu0 0.0
        %1828 = vmatpush1.msra.mxu0 0.0
        %1829 = vmatprep.mubr.f32.mxu0 0.0
        %1830 = vmatmul.mubr.f32.gmra.mrb[0].mxu0 %v1758
        %v1831 = vpop.f32.mrb[0].mxu0
        %v1832 = vadd.f32 %v457, %v1831
        %v1833 = vpop.f32.mrb[0].mxu0
        %v1834 = vadd.f32 %v461, %v1833
        %1835 = vdwg.mxu0
        %1836 = vmatprep.subr.mxu0 0.0
        %1837 = vmatpush1.msra.mxu0 %v405
        %1838 = vmatprep.subr.mxu0 0.0
        %1839 = vmatpush1.msra.mxu0 %v408
        %1840 = vmatprep.subr.mxu0 0.0
        %1841 = vmatpush1.msra.mxu0 %v411
        %1842 = vmatprep.subr.mxu0 0.0
        %1843 = vmatpush1.msra.mxu0 %v414
        %1844 = vmatprep.subr.mxu0 0.0
        %1845 = vmatpush1.msra.mxu0 %v417
        %1846 = vmatprep.subr.mxu0 0.0
        %1847 = vmatpush1.msra.mxu0 %v420
        %1848 = vmatprep.subr.mxu0 0.0
        %1849 = vmatpush1.msra.mxu0 %v423
        %1850 = vmatprep.subr.mxu0 0.0
        %1851 = vmatpush1.msra.mxu0 %v426
        %1852 = vmatprep.subr.mxu0 0.0
        %1853 = vmatpush1.msra.mxu0 %v429
        %1854 = vmatprep.subr.mxu0 0.0
        %1855 = vmatpush1.msra.mxu0 %v432
        %1856 = vmatprep.subr.mxu0 0.0
        %1857 = vmatpush1.msra.mxu0 %v435
        %1858 = vmatprep.subr.mxu0 0.0
        %1859 = vmatpush1.msra.mxu0 %v438
        %1860 = vmatprep.subr.mxu0 0.0
        %1861 = vmatpush1.msra.mxu0 %v441
        %1862 = vmatprep.subr.mxu0 0.0
        %1863 = vmatpush1.msra.mxu0 %v444
        %1864 = vmatprep.subr.mxu0 0.0
        %1865 = vmatpush1.msra.mxu0 %v447
        %1866 = vmatprep.subr.mxu0 0.0
        %1867 = vmatpush1.msra.mxu0 %v450
        %1868 = vmatprep.subr.mxu0 0.0
        %1869 = vmatpush1.msra.mxu0 0.0
        %1870 = vmatprep.subr.mxu0 0.0
        %1871 = vmatpush1.msra.mxu0 0.0
        %1872 = vmatprep.subr.mxu0 0.0
        %1873 = vmatpush1.msra.mxu0 0.0
        %1874 = vmatprep.subr.mxu0 0.0
        %1875 = vmatpush1.msra.mxu0 0.0
        %1876 = vmatprep.subr.mxu0 0.0
        %1877 = vmatpush1.msra.mxu0 0.0
        %1878 = vmatprep.subr.mxu0 0.0
        %1879 = vmatpush1.msra.mxu0 0.0
        %1880 = vmatprep.subr.mxu0 0.0
        %1881 = vmatpush1.msra.mxu0 0.0
        %1882 = vmatprep.subr.mxu0 0.0
        %1883 = vmatpush1.msra.mxu0 0.0
        %1884 = vmatprep.subr.mxu0 0.0
        %1885 = vmatpush1.msra.mxu0 0.0
        %1886 = vmatprep.subr.mxu0 0.0
        %1887 = vmatpush1.msra.mxu0 0.0
        %1888 = vmatprep.subr.mxu0 0.0
        %1889 = vmatpush1.msra.mxu0 0.0
        %1890 = vmatprep.subr.mxu0 0.0
        %1891 = vmatpush1.msra.mxu0 0.0
        %1892 = vmatprep.subr.mxu0 0.0
        %1893 = vmatpush1.msra.mxu0 0.0
        %1894 = vmatprep.subr.mxu0 0.0
        %1895 = vmatpush1.msra.mxu0 0.0
        %1896 = vmatprep.subr.mxu0 0.0
        %1897 = vmatpush1.msra.mxu0 0.0
        %1898 = vmatprep.subr.mxu0 0.0
        %1899 = vmatpush1.msra.mxu0 0.0
        %1900 = vmatprep.mubr.f32.mxu0 0.0
        %1901 = vmatmul.mubr.f32.gmra.mrb[0].mxu0 %v1758
        %v1902 = vpop.f32.mrb[0].mxu0
        %v1903 = vadd.f32 %v465, %v1902
        %v1904 = vpop.f32.mrb[0].mxu0
        %1905 = vdwg.mxu0
        %v1906 = vadd.f32 %v1762, %v1832
        %v1907 = vxor.u32 %v1906, 2147483648
        %v1908 = vmul.f32 %v1907, 1.442695
        %v1909 = vpow.pop %v1908
        %v1910 = vadd.f32 %v1909, 1.0
        %v1911 = vrcp.pop %v1910
        %v1912 = vmul.f32 1.0, %v1911
        %v1913 = vadd.f32 %v1763, %v1834
        %v1914 = vxor.u32 %v1913, 2147483648
        %v1915 = vmul.f32 %v1914, 1.442695
        %v1916 = vpow.pop %v1915
        %v1917 = vadd.f32 %v1916, 1.0
        %v1918 = vrcp.pop %v1917
        %v1919 = vmul.f32 1.0, %v1918
        %v1920 = vmul.f32 %v1912, %v1903
        %v1921 = vadd.f32 %v1764, %v1920
        %v1922 = vtanh.pop %v1921
        %v1923 = vsub.f32 1.0, %v1919
        %v1924 = vmul.f32 %v1923, %v1922
        %v1925 = vmul.f32 %v1919, %v1758
        %v1926 = vadd.f32 %v1924, %v1925
        %s1927 = scalar_lea.vmem [#allocation9], 48
        %1928 = vst [vmem:[%s1927] sm:$0xff] %v1926
        %s1929 = scalar_lea.vmem [#allocation2], 168
        %v1930 = vld [vmem:[%s1929] sm:$0xff]
        %v1931 = vld [vmem:[%s1929 + $0x8] sm:$0xff]
        %v1932 = vld [vmem:[%s1929 + $0x10] sm:$0xff]
        %1933 = vmatprep.subr.mxu0 %v404
        %1934 = vmatpush1.msra.mxu0 %v403
        %1935 = vmatprep.subr.mxu0 %v407
        %1936 = vmatpush1.msra.mxu0 %v406
        %1937 = vmatprep.subr.mxu0 %v410
        %1938 = vmatpush1.msra.mxu0 %v409
        %1939 = vmatprep.subr.mxu0 %v413
        %1940 = vmatpush1.msra.mxu0 %v412
        %1941 = vmatprep.subr.mxu0 %v416
        %1942 = vmatpush1.msra.mxu0 %v415
        %1943 = vmatprep.subr.mxu0 %v419
        %1944 = vmatpush1.msra.mxu0 %v418
        %1945 = vmatprep.subr.mxu0 %v422
        %1946 = vmatpush1.msra.mxu0 %v421
        %1947 = vmatprep.subr.mxu0 %v425
        %1948 = vmatpush1.msra.mxu0 %v424
        %1949 = vmatprep.subr.mxu0 %v428
        %1950 = vmatpush1.msra.mxu0 %v427
        %1951 = vmatprep.subr.mxu0 %v431
        %1952 = vmatpush1.msra.mxu0 %v430
        %1953 = vmatprep.subr.mxu0 %v434
        %1954 = vmatpush1.msra.mxu0 %v433
        %1955 = vmatprep.subr.mxu0 %v437
        %1956 = vmatpush1.msra.mxu0 %v436
        %1957 = vmatprep.subr.mxu0 %v440
        %1958 = vmatpush1.msra.mxu0 %v439
        %1959 = vmatprep.subr.mxu0 %v443
        %1960 = vmatpush1.msra.mxu0 %v442
        %1961 = vmatprep.subr.mxu0 %v446
        %1962 = vmatpush1.msra.mxu0 %v445
        %1963 = vmatprep.subr.mxu0 %v449
        %1964 = vmatpush1.msra.mxu0 %v448
        %1965 = vmatprep.subr.mxu0 0.0
        %1966 = vmatpush1.msra.mxu0 0.0
        %1967 = vmatprep.subr.mxu0 0.0
        %1968 = vmatpush1.msra.mxu0 0.0
        %1969 = vmatprep.subr.mxu0 0.0
        %1970 = vmatpush1.msra.mxu0 0.0
        %1971 = vmatprep.subr.mxu0 0.0
        %1972 = vmatpush1.msra.mxu0 0.0
        %1973 = vmatprep.subr.mxu0 0.0
        %1974 = vmatpush1.msra.mxu0 0.0
        %1975 = vmatprep.subr.mxu0 0.0
        %1976 = vmatpush1.msra.mxu0 0.0
        %1977 = vmatprep.subr.mxu0 0.0
        %1978 = vmatpush1.msra.mxu0 0.0
        %1979 = vmatprep.subr.mxu0 0.0
        %1980 = vmatpush1.msra.mxu0 0.0
        %1981 = vmatprep.subr.mxu0 0.0
        %1982 = vmatpush1.msra.mxu0 0.0
        %1983 = vmatprep.subr.mxu0 0.0
        %1984 = vmatpush1.msra.mxu0 0.0
        %1985 = vmatprep.subr.mxu0 0.0
        %1986 = vmatpush1.msra.mxu0 0.0
        %1987 = vmatprep.subr.mxu0 0.0
        %1988 = vmatpush1.msra.mxu0 0.0
        %1989 = vmatprep.subr.mxu0 0.0
        %1990 = vmatpush1.msra.mxu0 0.0
        %1991 = vmatprep.subr.mxu0 0.0
        %1992 = vmatpush1.msra.mxu0 0.0
        %1993 = vmatprep.subr.mxu0 0.0
        %1994 = vmatpush1.msra.mxu0 0.0
        %1995 = vmatprep.subr.mxu0 0.0
        %1996 = vmatpush1.msra.mxu0 0.0
        %1997 = vmatprep.mubr.f32.mxu0 0.0
        %1998 = vmatmul.mubr.f32.gmra.mrb[0].mxu0 %v1926
        %v1999 = vpop.f32.mrb[0].mxu0
        %v2000 = vadd.f32 %v457, %v1999
        %v2001 = vpop.f32.mrb[0].mxu0
        %v2002 = vadd.f32 %v461, %v2001
        %2003 = vdwg.mxu0
        %2004 = vmatprep.subr.mxu0 0.0
        %2005 = vmatpush1.msra.mxu0 %v405
        %2006 = vmatprep.subr.mxu0 0.0
        %2007 = vmatpush1.msra.mxu0 %v408
        %2008 = vmatprep.subr.mxu0 0.0
        %2009 = vmatpush1.msra.mxu0 %v411
        %2010 = vmatprep.subr.mxu0 0.0
        %2011 = vmatpush1.msra.mxu0 %v414
        %2012 = vmatprep.subr.mxu0 0.0
        %2013 = vmatpush1.msra.mxu0 %v417
        %2014 = vmatprep.subr.mxu0 0.0
        %2015 = vmatpush1.msra.mxu0 %v420
        %2016 = vmatprep.subr.mxu0 0.0
        %2017 = vmatpush1.msra.mxu0 %v423
        %2018 = vmatprep.subr.mxu0 0.0
        %2019 = vmatpush1.msra.mxu0 %v426
        %2020 = vmatprep.subr.mxu0 0.0
        %2021 = vmatpush1.msra.mxu0 %v429
        %2022 = vmatprep.subr.mxu0 0.0
        %2023 = vmatpush1.msra.mxu0 %v432
        %2024 = vmatprep.subr.mxu0 0.0
        %2025 = vmatpush1.msra.mxu0 %v435
        %2026 = vmatprep.subr.mxu0 0.0
        %2027 = vmatpush1.msra.mxu0 %v438
        %2028 = vmatprep.subr.mxu0 0.0
        %2029 = vmatpush1.msra.mxu0 %v441
        %2030 = vmatprep.subr.mxu0 0.0
        %2031 = vmatpush1.msra.mxu0 %v444
        %2032 = vmatprep.subr.mxu0 0.0
        %2033 = vmatpush1.msra.mxu0 %v447
        %2034 = vmatprep.subr.mxu0 0.0
        %2035 = vmatpush1.msra.mxu0 %v450
        %2036 = vmatprep.subr.mxu0 0.0
        %2037 = vmatpush1.msra.mxu0 0.0
        %2038 = vmatprep.subr.mxu0 0.0
        %2039 = vmatpush1.msra.mxu0 0.0
        %2040 = vmatprep.subr.mxu0 0.0
        %2041 = vmatpush1.msra.mxu0 0.0
        %2042 = vmatprep.subr.mxu0 0.0
        %2043 = vmatpush1.msra.mxu0 0.0
        %2044 = vmatprep.subr.mxu0 0.0
        %2045 = vmatpush1.msra.mxu0 0.0
        %2046 = vmatprep.subr.mxu0 0.0
        %2047 = vmatpush1.msra.mxu0 0.0
        %2048 = vmatprep.subr.mxu0 0.0
        %2049 = vmatpush1.msra.mxu0 0.0
        %2050 = vmatprep.subr.mxu0 0.0
        %2051 = vmatpush1.msra.mxu0 0.0
        %2052 = vmatprep.subr.mxu0 0.0
        %2053 = vmatpush1.msra.mxu0 0.0
        %2054 = vmatprep.subr.mxu0 0.0
        %2055 = vmatpush1.msra.mxu0 0.0
        %2056 = vmatprep.subr.mxu0 0.0
        %2057 = vmatpush1.msra.mxu0 0.0
        %2058 = vmatprep.subr.mxu0 0.0
        %2059 = vmatpush1.msra.mxu0 0.0
        %2060 = vmatprep.subr.mxu0 0.0
        %2061 = vmatpush1.msra.mxu0 0.0
        %2062 = vmatprep.subr.mxu0 0.0
        %2063 = vmatpush1.msra.mxu0 0.0
        %2064 = vmatprep.subr.mxu0 0.0
        %2065 = vmatpush1.msra.mxu0 0.0
        %2066 = vmatprep.subr.mxu0 0.0
        %2067 = vmatpush1.msra.mxu0 0.0
        %2068 = vmatprep.mubr.f32.mxu0 0.0
        %2069 = vmatmul.mubr.f32.gmra.mrb[0].mxu0 %v1926
        %v2070 = vpop.f32.mrb[0].mxu0
        %v2071 = vadd.f32 %v465, %v2070
        %v2072 = vpop.f32.mrb[0].mxu0
        %2073 = vdwg.mxu0
        %v2074 = vadd.f32 %v1930, %v2000
        %v2075 = vxor.u32 %v2074, 2147483648
        %v2076 = vmul.f32 %v2075, 1.442695
        %v2077 = vpow.pop %v2076
        %v2078 = vadd.f32 %v2077, 1.0
        %v2079 = vrcp.pop %v2078
        %v2080 = vmul.f32 1.0, %v2079
        %v2081 = vadd.f32 %v1931, %v2002
        %v2082 = vxor.u32 %v2081, 2147483648
        %v2083 = vmul.f32 %v2082, 1.442695
        %v2084 = vpow.pop %v2083
        %v2085 = vadd.f32 %v2084, 1.0
        %v2086 = vrcp.pop %v2085
        %v2087 = vmul.f32 1.0, %v2086
        %v2088 = vmul.f32 %v2080, %v2071
        %v2089 = vadd.f32 %v1932, %v2088
        %v2090 = vtanh.pop %v2089
        %v2091 = vsub.f32 1.0, %v2087
        %v2092 = vmul.f32 %v2091, %v2090
        %v2093 = vmul.f32 %v2087, %v1926
        %v2094 = vadd.f32 %v2092, %v2093
        %s2095 = scalar_lea.vmem [#allocation9], 56
        %2096 = vst [vmem:[%s2095] sm:$0xff] %v2094
        %2097 = vst [vmem:[%s346] sm:$0xff] %v2094
        %s2098 = sand.u32 %s180, 1
        %s2099 = scalar_lea.sflag [#allocation11], %s2098
        %s2100 = sand.u32 %s180, 1
        %s2101 = smul.addr %s2100, 8
        %s2102 = scalar_lea.vmem [#allocation10], %s2101
        // Predicated region
        $region53: #{tpu_custom_call.1} parent=39 // pred_check
          %p2103 = pneg %p164
        $region54: #{tpu_custom_call.1} parent=39 // pred_check_branch
          %2105 = sbr.rel (%p2103) target = $region56
        $region55: #{tpu_custom_call.1} parent=39 // pred_region
          %s2107 = ssub.s32 1024, 1024
          %2108 = vsyncadd [#allocation5], %s2107
          %s2109 = sshll.u32 [#allocation9], 4
          %s2110 = int_to_ptr.vmem [resolvable:$true] %s2109
          %2115 = dma.vmem_to_hbm [thread:$0]  %s2110, 1024, %s5, [#allocation5], 128, 128, 8
        $region56: #{tpu_custom_call.1} parent=39 // pred_fallthru
          _
        // Predicated region
        $region57: #{tpu_custom_call.1} parent=39 // pred_check
          %p2116 = pneg %p190
        $region58: #{tpu_custom_call.1} parent=39 // pred_check_branch
          %2118 = sbr.rel (%p2116) target = $region60
        $region59: #{tpu_custom_call.1} parent=39 // pred_region
          %s2120 = ssub.s32 128, 128
          %2121 = vsyncadd %s2099, %s2120
          %s2122 = smul.addr %s26, 128
          %s2123 = scalar_lea.hbm %s6, %s2122
          %s2125 = sshll.u32 %s2102, 4
          %s2126 = int_to_ptr.vmem [resolvable:$true] %s2125
          %2128 = dma.vmem_to_hbm [thread:$0]  %s2126, 128, %s2123, %s2099
        $region60: #{tpu_custom_call.1} parent=39 // pred_fallthru
          _
        // Predicated region
        $region61: #{tpu_custom_call.1} parent=39 // pred_check
          %p2129 = pneg %p164
        $region62: #{tpu_custom_call.1} parent=39 // pred_check_branch
          %2131 = sbr.rel (%p2129) target = $region64
        $region63: #{tpu_custom_call.1} parent=39 // pred_region
          %2132 = dma.done [#allocation5], 1024
        $region64: #{tpu_custom_call.1} parent=39 // pred_fallthru
          _
      $region40: #{tpu_custom_call.1} parent=5 // pred_fallthru
        _
      %p2133 = scmp.le.s32.totalorder 2, %s21
      // Predicated region
      $region65: #{tpu_custom_call.1} parent=5 // pred_check
        %p2134 = pneg %p2133
      $region66: #{tpu_custom_call.1} parent=5 // pred_check_branch
        %2136 = sbr.rel (%p2134) target = $region68
      $region67: #{tpu_custom_call.1} parent=5 // pred_region
        %s2137 = ssub.s32 %s21, 2
        // Predicated region
        $region69: #{tpu_custom_call.1} parent=67 // pred_check
          %p2138 = pneg %p196
        $region70: #{tpu_custom_call.1} parent=67 // pred_check_branch
          %2140 = sbr.rel (%p2138) target = $region72
        $region71: #{tpu_custom_call.1} parent=67 // pred_region
          %s2141 = sand.u32 %s181, 1
          %s2142 = scalar_lea.sflag [#allocation11], %s2141
          %s2143 = sand.u32 %s181, 1
          %s2144 = smul.addr %s2143, 8
          %s2145 = scalar_lea.vmem [#allocation10], %s2144
          %2146 = dma.done %s2142, 128
        $region72: #{tpu_custom_call.1} parent=67 // pred_fallthru
          _
      $region68: #{tpu_custom_call.1} parent=5 // pred_fallthru
        _
    $region6: #{tpu_custom_call.1} parent=1 // loop_footer
      %s25 = sadd.s32 1, %s21
    $region7: #{tpu_custom_call.1} parent=1 // loop_footer_branch
      %20 = sbr.rel target = $region3
    $region8: #{tpu_custom_call.1} parent=1 // loop_exit
      _
    %2147 = vsyncpa [#allocation4], 1
    %s2148 = scalar_lea.sflag [#allocation4], 1
    %2149 = vsyncpa %s2148, 1
    %2150 = vsyncpa [#allocation7], 1
    %s2151 = scalar_lea.sflag [#allocation7], 1
    %2152 = vsyncpa %s2151, 1
    %2153 = vsyncpa [#allocation5], 1
    %s2154 = scalar_lea.sflag [#allocation5], 1
    %2155 = vsyncpa %s2154, 1
    %2156 = vsyncpa [#allocation11], 1
    %s2157 = scalar_lea.sflag [#allocation11], 1
    %2158 = vsyncpa %s2157, 1

</llo_original>
